<compile_context>
chip_gen: v5e
topology: v5e:2x2
jax: 0.10.0
libtpu: 0.0.40
codegen_flags: <defaults>
</compile_context>

<pallas_src>
import math
import numpy as np
import jax
import jax.numpy as jnp
from jax import lax
from jax.experimental import pallas as pl
from jax.experimental.pallas import tpu as pltpu

IN_SHAPE = (16, 16)                 # DCfg.inShape
BASE_CHANNELS = 16
DISCRIMINATE_PAIR = False
LEAKY_SLOPE = 0.2

C1 = 1 * BASE_CHANNELS              # 16  (conv1 out channels)
C2 = 2 * BASE_CHANNELS              # 32  (conv2 out channels)
HID = 4 * BASE_CHANNELS             # 64  (fc1 out features)
OH1 = (IN_SHAPE[0] - 3) // 2 + 1    # 7
OW1 = (IN_SHAPE[1] - 3) // 2 + 1    # 7
OH2 = (OH1 - 3) // 2 + 1            # 3
OW2 = (OW1 - 3) // 2 + 1            # 3


# ---------------------------------------------------------------------------
# Single fused Pallas kernel: normalize -> conv1 -> conv2 -> fc1 -> fc2 -> sigmoid
# ---------------------------------------------------------------------------

def _fused_forward_kernel(x_ref, w1_ref, b1_ref, w2_ref, b2_ref,
                          w3_ref, b3_ref, w4_ref, b4_ref, o_ref):
    # ---- per-image std/mean normalization (torch.std_mean unbiased + inverseElements) ----
    x = x_ref[...]                                        # (NB, 256) f32
    n = x.shape[-1]
    mean = jnp.mean(x, axis=-1, keepdims=True)            # (NB, 1)
    d = x - mean
    var = jnp.sum(d * d, axis=-1, keepdims=True) * (1.0 / (n - 1))
    inv_std = jnp.where(var > 0, lax.rsqrt(var), 0.0)     # EUP rsqrt; 0 where std == 0

    W = IN_SHAPE[1]
    # Normalized image rows used by conv1 (stride 2, k=3 -> rows 0..14), cast to bf16 once.
    rows = [((x_ref[:, pl.ds(i * W, W)] - mean) * inv_std).astype(jnp.bfloat16)
            for i in range(2 * (OH1 - 1) + 3)]            # 15 rows, each (NB, 16)

    def leaky(v):
        return jnp.where(v >= 0, v, LEAKY_SLOPE * v)

    # ---- conv1 (1->16, k3, s2): per output row, 3 tap-row matmuls (16 -> 7*16 lanes) ----
    b1 = b1_ref[...]                                      # (1, 112) f32
    h1 = []
    for oy in range(OH1):                                 # 7 output rows
        acc = b1
        for ky in range(3):
            acc = acc + jnp.dot(rows[2 * oy + ky], w1_ref[ky],
                                preferred_element_type=jnp.float32)
        h1.append(leaky(acc).astype(jnp.bfloat16))        # (NB, 112), lane = ox*16 + c

    # ---- conv2 (16->32, k3, s2): per output row, 3 tap-row matmuls (112 -> 3*32 lanes) ----
    b2 = b2_ref[...]                                      # (1, 96) f32
    h2 = []
    for qy in range(OH2):                                 # 3 output rows
        acc = b2
        for ky in range(3):
            acc = acc + jnp.dot(h1[2 * qy + ky], w2_ref[ky],
                                preferred_element_type=jnp.float32)
        h2.append(leaky(acc).astype(jnp.bfloat16))        # (NB, 96), lane = qx*32 + c2

    # ---- fc1 (288 -> 64); torch Flatten order folded into the packed weights ----
    z = b3_ref[...]                                       # (1, 64) f32
    for qy in range(OH2):
        z = z + jnp.dot(h2[qy], w3_ref[qy], preferred_element_type=jnp.float32)
    z = leaky(z)                                          # (NB, 64) f32

    # ---- fc2 (64 -> 1): N=1, keep it off the MXU (broadcast-multiply + lane reduce) ----
    logit = jnp.sum(z * w4_ref[...], axis=-1, keepdims=True) + b4_ref[...]   # (NB, 1)

    # Sigmoid (EUP exp); logits are tiny with the 0.01-std init -> plain form is safe.
    o_ref[...] = (1.0 / (1.0 + jnp.exp(-logit))).astype(o_ref.dtype)


def fused_forward(x2d, pp):
    """x2d: (NB, H*W) f32, pp: dict of packed weights -> (NB, 1) probabilities."""
    NB = x2d.shape[0]
    args = (x2d, pp["w1"], pp["b1"], pp["w2"], pp["b2"],
            pp["w3"], pp["b3"], pp["w4"], pp["b4"])
    # Full-array blocks; weight index_maps are grid-invariant so weights are DMA'd once
    # per call (and would be reused across row tiles if a parallel batch axis is added).
    in_specs = [pl.BlockSpec(a.shape, lambda i, nd=a.ndim: (0,) * nd) for a in args]
    return pl.pallas_call(
        _fused_forward_kernel,
        out_shape=jax.ShapeDtypeStruct((NB, 1), jnp.float32),
        grid=(1,),
        in_specs=in_specs,
        out_specs=pl.BlockSpec((NB, 1), lambda i: (0, 0)),
        compiler_params=pltpu.CompilerParams(dimension_semantics=("arbitrary",)),
    )(*args)


# ---------------------------------------------------------------------------
# One-time host-side weight packing: fold stride-2 column gathers + layout into weights
# ---------------------------------------------------------------------------

def prepare_packed_params(params):
    w1 = np.asarray(params["conv1_w"], np.float32)    # (16, 1, 3, 3)  (Cout, Cin, kh, kw)
    b1 = np.asarray(params["conv1_b"], np.float32)    # (16,)
    w2 = np.asarray(params["conv2_w"], np.float32)    # (32, 16, 3, 3)
    b2 = np.asarray(params["conv2_b"], np.float32)    # (32,)
    w3 = np.asarray(params["fc1_w"], np.float32)      # (288, 64)  row = c2*9 + qy*3 + qx
    b3 = np.asarray(params["fc1_b"], np.float32)      # (64,)
    w4 = np.asarray(params["fc2_w"], np.float32)      # (64, 1)
    b4 = np.asarray(params["fc2_b"], np.float32)      # (1,)

    Wd = IN_SHAPE[1]

    # conv1 tap-row matrices: W1[ky][j, ox*C1 + c] = w1[c, 0, ky, kx]  where j = 2*ox + kx
    W1 = np.zeros((3, Wd, OW1 * C1), np.float32)
    for ky in range(3):
        for kx in range(3):
            for ox in range(OW1):
                W1[ky, 2 * ox + kx, ox * C1:(ox + 1) * C1] += w1[:, 0, ky, kx]

    # conv2 tap-row matrices: W2[ky][ox*C1 + c, qx*C2 + c2] = w2[c2, c, ky, kx], ox = 2*qx+kx
    W2 = np.zeros((3, OW1 * C1, OW2 * C2), np.float32)
    for ky in range(3):
        for kx in range(3):
            for qx in range(OW2):
                ox = 2 * qx + kx
                W2[ky, ox * C1:(ox + 1) * C1, qx * C2:(qx + 1) * C2] += w2[:, :, ky, kx].T

    # fc1 weights re-ordered so the kernel's (qx, c2) lane layout matches torch's
    # (c2, qy, qx) Flatten order: W3[qy][qx*C2 + c2, :] = fc1_w[c2*9 + qy*3 + qx, :]
    W3 = np.zeros((3, OW2 * C2, HID), np.float32)
    for qy in range(OH2):
        for qx in range(OW2):
            for c2 in range(C2):
                W3[qy, qx * C2 + c2, :] = w3[c2 * (OH2 * OW2) + qy * OW2 + qx, :]

    return {
        "w1": jnp.asarray(W1, jnp.bfloat16),                           # (3, 16, 112)
        "b1": jnp.asarray(np.tile(b1, OW1)[None, :], jnp.float32),     # (1, 112)
        "w2": jnp.asarray(W2, jnp.bfloat16),                           # (3, 112, 96)
        "b2": jnp.asarray(np.tile(b2, OW2)[None, :], jnp.float32),     # (1, 96)
        "w3": jnp.asarray(W3, jnp.bfloat16),                           # (3, 96, 64)
        "b3": jnp.asarray(b3[None, :], jnp.float32),                   # (1, 64)
        "w4": jnp.asarray(w4.reshape(1, -1), jnp.float32),             # (1, 64)
        "b4": jnp.asarray(b4.reshape(1, 1), jnp.float32),              # (1, 1)
    }


# ---------------------------------------------------------------------------
# DiscriminatorTemplate forward
# ---------------------------------------------------------------------------

def init_params(key):
    """Deterministic normal(0, 0.01) init matching fillWheights (torch layout)."""
    ch_in = 2 if DISCRIMINATE_PAIR else 1
    lin_channels = math.prod((1, C2, OH2, OW2))           # createHead's batch-1 probe: 288

    ks = jax.random.split(key, 8)
    s = 0.01
    return {
        "conv1_w": s * jax.random.normal(ks[0], (C1, ch_in, 3, 3), jnp.float32),
        "conv1_b": s * jax.random.normal(ks[1], (C1,), jnp.float32),
        "conv2_w": s * jax.random.normal(ks[2], (C2, C1, 3, 3), jnp.float32),
        "conv2_b": s * jax.random.normal(ks[3], (C2,), jnp.float32),
        "fc1_w":   s * jax.random.normal(ks[4], (lin_channels, HID), jnp.float32),
        "fc1_b":   s * jax.random.normal(ks[5], (HID,), jnp.float32),
        "fc2_w":   s * jax.random.normal(ks[6], (HID, 1), jnp.float32),
        "fc2_b":   s * jax.random.normal(ks[7], (1,), jnp.float32),
    }


def discriminator_forward(packed_params, images):
    """images: (B, H, W) or (B, C, H, W) float32 -> (B*C//2, 2) probabilities."""
    H, W = IN_SHAPE
    if images.ndim == 3:
        images = images[:, None, :, :]                    # unsqueeze(1)

    # TODO(synk): pytorch_amfill.ops.amfill (hole filling of non-positive pixels) is an
    # external custom op with no Pallas equivalent; inputs are assumed strictly positive,
    # so only the std/mean normalization (done inside the fused kernel) is applied.

    # discriminatePair == False: each (image, channel) plane is an independent sample.
    x2d = images.reshape(-1, H * W).astype(jnp.float32)   # (NB, 256)
    probs = fused_forward(x2d, packed_params)             # (NB, 1)

    if not DISCRIMINATE_PAIR:
        # the template's res.view(-1, 2) requires an even number of (image, channel) planes
        assert x2d.shape[0] % 2 == 0, "discriminatePair=False needs an even plane count"
        probs = probs.reshape(-1, 2)
    return probs


# ---------------------------------------------------------------------------
# Pure-JAX reference (numerical sanity check only)
# ---------------------------------------------------------------------------

def reference_forward(params, images):
    H, W = IN_SHAPE
    if images.ndim == 3:
        images = images[:, None, :, :]
    x = images.reshape(-1, 1, H, W).astype(jnp.float32)
    flat = x.reshape(x.shape[0], -1)
    mean = jnp.mean(flat, axis=-1, keepdims=True)
    d = flat - mean
    var = jnp.sum(d * d, axis=-1, keepdims=True) / (flat.shape[-1] - 1)
    std = jnp.sqrt(var)
    x = (d * jnp.where(std != 0, 1.0 / std, 0.0)).reshape(x.shape)

    def conv_leaky(x, w, b, stride):
        y = lax.conv_general_dilated(x, w, (stride, stride), "VALID",
                                     dimension_numbers=("NCHW", "OIHW", "NCHW"))
        y = y + b[None, :, None, None]
        return jnp.where(y >= 0, y, LEAKY_SLOPE * y)

    x = conv_leaky(x, params["conv1_w"], params["conv1_b"], 2)
    x = conv_leaky(x, params["conv2_w"], params["conv2_b"], 2)
    x = x.reshape(x.shape[0], -1)
    x = x @ params["fc1_w"] + params["fc1_b"]
    x = jnp.where(x >= 0, x, LEAKY_SLOPE * x)
    logit = x @ params["fc2_w"] + params["fc2_b"]
    return jax.nn.sigmoid(logit).reshape(-1, 2)


if __name__ == "__main__":
    key = jax.random.PRNGKey(0)
    pkey, xkey = jax.random.split(key)
    params = init_params(pkey)
    packed = prepare_packed_params(params)                # one-time packing (~113 KB bf16)

    # small deterministic input: batch of 2 images, (B, H, W), strictly positive
    images = jax.random.uniform(xkey, (2, *IN_SHAPE), jnp.float32,
                                minval=0.1, maxval=1.0)

    fwd = jax.jit(discriminator_forward)
    out = jax.block_until_ready(fwd(packed, images))

    assert out.shape == (1, 2)
    assert bool(jnp.all((out >= 0.0) & (out <= 1.0)))

    ref = jax.block_until_ready(reference_forward(params, images))
    assert bool(jnp.allclose(out, ref, atol=1e-3, rtol=1e-2)), (out, ref)

    print("KERNEL_OK")
</pallas_src>

<mosaic_0001>
module attributes {stable_mosaic.version = 11 : i64} {
  func.func @_fused_forward_kernel(%arg0: i32, %arg1: memref<2x256xf32, #tpu.memory_space<vmem>>, %arg2: memref<3x16x112xbf16, #tpu.memory_space<vmem>>, %arg3: memref<1x112xf32, #tpu.memory_space<vmem>>, %arg4: memref<3x112x96xbf16, #tpu.memory_space<vmem>>, %arg5: memref<1x96xf32, #tpu.memory_space<vmem>>, %arg6: memref<3x96x64xbf16, #tpu.memory_space<vmem>>, %arg7: memref<1x64xf32, #tpu.memory_space<vmem>>, %arg8: memref<1x64xf32, #tpu.memory_space<vmem>>, %arg9: memref<1x1xf32, #tpu.memory_space<vmem>>, %arg10: memref<2x1xf32, #tpu.memory_space<vmem>>) attributes {dimension_semantics = [#tpu.dimension_semantics<arbitrary>], iteration_bounds = array<i64: 1>, scalar_prefetch = 0 : i64, scratch_operands = 0 : i64, tpu.core_type = #tpu.core_type<tc>, window_params = [{pipeline_mode = #tpu.pipeline_mode<synchronous>, transform_indices = @transform_0, window_bounds = array<i64: 2, 256>}, {pipeline_mode = #tpu.pipeline_mode<synchronous>, transform_indices = @transform_1, window_bounds = array<i64: 3, 16, 112>}, {pipeline_mode = #tpu.pipeline_mode<synchronous>, transform_indices = @transform_2, window_bounds = array<i64: 1, 112>}, {pipeline_mode = #tpu.pipeline_mode<synchronous>, transform_indices = @transform_3, window_bounds = array<i64: 3, 112, 96>}, {pipeline_mode = #tpu.pipeline_mode<synchronous>, transform_indices = @transform_4, window_bounds = array<i64: 1, 96>}, {pipeline_mode = #tpu.pipeline_mode<synchronous>, transform_indices = @transform_5, window_bounds = array<i64: 3, 96, 64>}, {pipeline_mode = #tpu.pipeline_mode<synchronous>, transform_indices = @transform_6, window_bounds = array<i64: 1, 64>}, {pipeline_mode = #tpu.pipeline_mode<synchronous>, transform_indices = @transform_7, window_bounds = array<i64: 1, 64>}, {pipeline_mode = #tpu.pipeline_mode<synchronous>, transform_indices = @transform_8, window_bounds = array<i64: 1, 1>}, {pipeline_mode = #tpu.pipeline_mode<synchronous>, transform_indices = @transform_9, window_bounds = array<i64: 2, 1>}]} {
    %c0 = arith.constant 0 : index
    %c0_0 = arith.constant 0 : index
    %0 = vector.load %arg1[%c0, %c0_0] : memref<2x256xf32, #tpu.memory_space<vmem>>, vector<2x256xf32>
    %cst = arith.constant dense<0.000000e+00> : vector<2xf32>
    %1 = vector.multi_reduction <add>, %0, %cst [1] : vector<2x256xf32> to vector<2xf32>
    %2 = vector.shape_cast %1 : vector<2xf32> to vector<2x1xf32>
    %cst_1 = arith.constant 2.560000e+02 : f32
    %3 = vector.broadcast %cst_1 : f32 to vector<2x1xf32>
    %4 = arith.divf %2, %3 : vector<2x1xf32>
    %5 = vector.broadcast %4 : vector<2x1xf32> to vector<2x256xf32>
    %6 = arith.subf %0, %5 : vector<2x256xf32>
    %7 = arith.mulf %6, %6 : vector<2x256xf32>
    %cst_2 = arith.constant dense<0.000000e+00> : vector<2xf32>
    %8 = vector.multi_reduction <add>, %7, %cst_2 [1] : vector<2x256xf32> to vector<2xf32>
    %9 = vector.shape_cast %8 : vector<2xf32> to vector<2x1xf32>
    %cst_3 = arith.constant 0.00392156886 : f32
    %10 = vector.broadcast %cst_3 : f32 to vector<2x1xf32>
    %11 = arith.mulf %9, %10 : vector<2x1xf32>
    %cst_4 = arith.constant 0.000000e+00 : f32
    %12 = vector.broadcast %cst_4 : f32 to vector<2x1xf32>
    %13 = arith.cmpf ogt, %11, %12 : vector<2x1xf32>
    %14 = math.rsqrt %11 : vector<2x1xf32>
    %cst_5 = arith.constant 0.000000e+00 : f32
    %15 = vector.broadcast %cst_5 : f32 to vector<2x1xf32>
    %16 = arith.select %13, %14, %15 : vector<2x1xi1>, vector<2x1xf32>
    %c0_6 = arith.constant 0 : index
    %c0_7 = arith.constant 0 : index
    %17 = vector.load %arg1[%c0_6, %c0_7] : memref<2x256xf32, #tpu.memory_space<vmem>>, vector<2x16xf32>
    %18 = vector.broadcast %4 : vector<2x1xf32> to vector<2x16xf32>
    %19 = arith.subf %17, %18 : vector<2x16xf32>
    %20 = vector.broadcast %16 : vector<2x1xf32> to vector<2x16xf32>
    %21 = arith.mulf %19, %20 : vector<2x16xf32>
    %22 = arith.truncf %21 : vector<2x16xf32> to vector<2x16xbf16>
    %c0_8 = arith.constant 0 : index
    %c16 = arith.constant 16 : index
    %23 = vector.load %arg1[%c0_8, %c16] : memref<2x256xf32, #tpu.memory_space<vmem>>, vector<2x16xf32>
    %24 = vector.broadcast %4 : vector<2x1xf32> to vector<2x16xf32>
    %25 = arith.subf %23, %24 : vector<2x16xf32>
    %26 = vector.broadcast %16 : vector<2x1xf32> to vector<2x16xf32>
    %27 = arith.mulf %25, %26 : vector<2x16xf32>
    %28 = arith.truncf %27 : vector<2x16xf32> to vector<2x16xbf16>
    %c0_9 = arith.constant 0 : index
    %c32 = arith.constant 32 : index
    %29 = vector.load %arg1[%c0_9, %c32] : memref<2x256xf32, #tpu.memory_space<vmem>>, vector<2x16xf32>
    %30 = vector.broadcast %4 : vector<2x1xf32> to vector<2x16xf32>
    %31 = arith.subf %29, %30 : vector<2x16xf32>
    %32 = vector.broadcast %16 : vector<2x1xf32> to vector<2x16xf32>
    %33 = arith.mulf %31, %32 : vector<2x16xf32>
    %34 = arith.truncf %33 : vector<2x16xf32> to vector<2x16xbf16>
    %c0_10 = arith.constant 0 : index
    %c48 = arith.constant 48 : index
    %35 = vector.load %arg1[%c0_10, %c48] : memref<2x256xf32, #tpu.memory_space<vmem>>, vector<2x16xf32>
    %36 = vector.broadcast %4 : vector<2x1xf32> to vector<2x16xf32>
    %37 = arith.subf %35, %36 : vector<2x16xf32>
    %38 = vector.broadcast %16 : vector<2x1xf32> to vector<2x16xf32>
    %39 = arith.mulf %37, %38 : vector<2x16xf32>
    %40 = arith.truncf %39 : vector<2x16xf32> to vector<2x16xbf16>
    %c0_11 = arith.constant 0 : index
    %c64 = arith.constant 64 : index
    %41 = vector.load %arg1[%c0_11, %c64] : memref<2x256xf32, #tpu.memory_space<vmem>>, vector<2x16xf32>
    %42 = vector.broadcast %4 : vector<2x1xf32> to vector<2x16xf32>
    %43 = arith.subf %41, %42 : vector<2x16xf32>
    %44 = vector.broadcast %16 : vector<2x1xf32> to vector<2x16xf32>
    %45 = arith.mulf %43, %44 : vector<2x16xf32>
    %46 = arith.truncf %45 : vector<2x16xf32> to vector<2x16xbf16>
    %c0_12 = arith.constant 0 : index
    %c80 = arith.constant 80 : index
    %47 = vector.load %arg1[%c0_12, %c80] : memref<2x256xf32, #tpu.memory_space<vmem>>, vector<2x16xf32>
    %48 = vector.broadcast %4 : vector<2x1xf32> to vector<2x16xf32>
    %49 = arith.subf %47, %48 : vector<2x16xf32>
    %50 = vector.broadcast %16 : vector<2x1xf32> to vector<2x16xf32>
    %51 = arith.mulf %49, %50 : vector<2x16xf32>
    %52 = arith.truncf %51 : vector<2x16xf32> to vector<2x16xbf16>
    %c0_13 = arith.constant 0 : index
    %c96 = arith.constant 96 : index
    %53 = vector.load %arg1[%c0_13, %c96] : memref<2x256xf32, #tpu.memory_space<vmem>>, vector<2x16xf32>
    %54 = vector.broadcast %4 : vector<2x1xf32> to vector<2x16xf32>
    %55 = arith.subf %53, %54 : vector<2x16xf32>
    %56 = vector.broadcast %16 : vector<2x1xf32> to vector<2x16xf32>
    %57 = arith.mulf %55, %56 : vector<2x16xf32>
    %58 = arith.truncf %57 : vector<2x16xf32> to vector<2x16xbf16>
    %c0_14 = arith.constant 0 : index
    %c112 = arith.constant 112 : index
    %59 = vector.load %arg1[%c0_14, %c112] : memref<2x256xf32, #tpu.memory_space<vmem>>, vector<2x16xf32>
    %60 = vector.broadcast %4 : vector<2x1xf32> to vector<2x16xf32>
    %61 = arith.subf %59, %60 : vector<2x16xf32>
    %62 = vector.broadcast %16 : vector<2x1xf32> to vector<2x16xf32>
    %63 = arith.mulf %61, %62 : vector<2x16xf32>
    %64 = arith.truncf %63 : vector<2x16xf32> to vector<2x16xbf16>
    %c0_15 = arith.constant 0 : index
    %c128 = arith.constant 128 : index
    %65 = vector.load %arg1[%c0_15, %c128] : memref<2x256xf32, #tpu.memory_space<vmem>>, vector<2x16xf32>
    %66 = vector.broadcast %4 : vector<2x1xf32> to vector<2x16xf32>
    %67 = arith.subf %65, %66 : vector<2x16xf32>
    %68 = vector.broadcast %16 : vector<2x1xf32> to vector<2x16xf32>
    %69 = arith.mulf %67, %68 : vector<2x16xf32>
    %70 = arith.truncf %69 : vector<2x16xf32> to vector<2x16xbf16>
    %c0_16 = arith.constant 0 : index
    %c144 = arith.constant 144 : index
    %71 = vector.load %arg1[%c0_16, %c144] : memref<2x256xf32, #tpu.memory_space<vmem>>, vector<2x16xf32>
    %72 = vector.broadcast %4 : vector<2x1xf32> to vector<2x16xf32>
    %73 = arith.subf %71, %72 : vector<2x16xf32>
    %74 = vector.broadcast %16 : vector<2x1xf32> to vector<2x16xf32>
    %75 = arith.mulf %73, %74 : vector<2x16xf32>
    %76 = arith.truncf %75 : vector<2x16xf32> to vector<2x16xbf16>
    %c0_17 = arith.constant 0 : index
    %c160 = arith.constant 160 : index
    %77 = vector.load %arg1[%c0_17, %c160] : memref<2x256xf32, #tpu.memory_space<vmem>>, vector<2x16xf32>
    %78 = vector.broadcast %4 : vector<2x1xf32> to vector<2x16xf32>
    %79 = arith.subf %77, %78 : vector<2x16xf32>
    %80 = vector.broadcast %16 : vector<2x1xf32> to vector<2x16xf32>
    %81 = arith.mulf %79, %80 : vector<2x16xf32>
    %82 = arith.truncf %81 : vector<2x16xf32> to vector<2x16xbf16>
    %c0_18 = arith.constant 0 : index
    %c176 = arith.constant 176 : index
    %83 = vector.load %arg1[%c0_18, %c176] : memref<2x256xf32, #tpu.memory_space<vmem>>, vector<2x16xf32>
    %84 = vector.broadcast %4 : vector<2x1xf32> to vector<2x16xf32>
    %85 = arith.subf %83, %84 : vector<2x16xf32>
    %86 = vector.broadcast %16 : vector<2x1xf32> to vector<2x16xf32>
    %87 = arith.mulf %85, %86 : vector<2x16xf32>
    %88 = arith.truncf %87 : vector<2x16xf32> to vector<2x16xbf16>
    %c0_19 = arith.constant 0 : index
    %c192 = arith.constant 192 : index
    %89 = vector.load %arg1[%c0_19, %c192] : memref<2x256xf32, #tpu.memory_space<vmem>>, vector<2x16xf32>
    %90 = vector.broadcast %4 : vector<2x1xf32> to vector<2x16xf32>
    %91 = arith.subf %89, %90 : vector<2x16xf32>
    %92 = vector.broadcast %16 : vector<2x1xf32> to vector<2x16xf32>
    %93 = arith.mulf %91, %92 : vector<2x16xf32>
    %94 = arith.truncf %93 : vector<2x16xf32> to vector<2x16xbf16>
    %c0_20 = arith.constant 0 : index
    %c208 = arith.constant 208 : index
    %95 = vector.load %arg1[%c0_20, %c208] : memref<2x256xf32, #tpu.memory_space<vmem>>, vector<2x16xf32>
    %96 = vector.broadcast %4 : vector<2x1xf32> to vector<2x16xf32>
    %97 = arith.subf %95, %96 : vector<2x16xf32>
    %98 = vector.broadcast %16 : vector<2x1xf32> to vector<2x16xf32>
    %99 = arith.mulf %97, %98 : vector<2x16xf32>
    %100 = arith.truncf %99 : vector<2x16xf32> to vector<2x16xbf16>
    %c0_21 = arith.constant 0 : index
    %c224 = arith.constant 224 : index
    %101 = vector.load %arg1[%c0_21, %c224] : memref<2x256xf32, #tpu.memory_space<vmem>>, vector<2x16xf32>
    %102 = vector.broadcast %4 : vector<2x1xf32> to vector<2x16xf32>
    %103 = arith.subf %101, %102 : vector<2x16xf32>
    %104 = vector.broadcast %16 : vector<2x1xf32> to vector<2x16xf32>
    %105 = arith.mulf %103, %104 : vector<2x16xf32>
    %106 = arith.truncf %105 : vector<2x16xf32> to vector<2x16xbf16>
    %c0_22 = arith.constant 0 : index
    %c0_23 = arith.constant 0 : index
    %107 = vector.load %arg3[%c0_22, %c0_23] : memref<1x112xf32, #tpu.memory_space<vmem>>, vector<1x112xf32>
    %c0_24 = arith.constant 0 : index
    %c0_25 = arith.constant 0 : index
    %c0_26 = arith.constant 0 : index
    %108 = vector.load %arg2[%c0_24, %c0_25, %c0_26] : memref<3x16x112xbf16, #tpu.memory_space<vmem>>, vector<1x16x112xbf16>
    %109 = vector.shape_cast %108 : vector<1x16x112xbf16> to vector<16x112xbf16>
    %cst_27 = arith.constant dense<0.000000e+00> : vector<2x112xf32>
    %110 = tpu.matmul %22, %109, %cst_27 {dimension_numbers = #tpu.dot_dimension_numbers<[1], [0], [0], [1], [0, 0, 1, 1], [], []>} : vector<2x16xbf16>, vector<16x112xbf16>, vector<2x112xf32> -> vector<2x112xf32>
    %111 = vector.broadcast %107 : vector<1x112xf32> to vector<2x112xf32>
    %112 = arith.addf %111, %110 : vector<2x112xf32>
    %c1 = arith.constant 1 : index
    %c0_28 = arith.constant 0 : index
    %c0_29 = arith.constant 0 : index
    %113 = vector.load %arg2[%c1, %c0_28, %c0_29] : memref<3x16x112xbf16, #tpu.memory_space<vmem>>, vector<1x16x112xbf16>
    %114 = vector.shape_cast %113 : vector<1x16x112xbf16> to vector<16x112xbf16>
    %cst_30 = arith.constant dense<0.000000e+00> : vector<2x112xf32>
    %115 = tpu.matmul %28, %114, %cst_30 {dimension_numbers = #tpu.dot_dimension_numbers<[1], [0], [0], [1], [0, 0, 1, 1], [], []>} : vector<2x16xbf16>, vector<16x112xbf16>, vector<2x112xf32> -> vector<2x112xf32>
    %116 = arith.addf %112, %115 : vector<2x112xf32>
    %c2 = arith.constant 2 : index
    %c0_31 = arith.constant 0 : index
    %c0_32 = arith.constant 0 : index
    %117 = vector.load %arg2[%c2, %c0_31, %c0_32] : memref<3x16x112xbf16, #tpu.memory_space<vmem>>, vector<1x16x112xbf16>
    %118 = vector.shape_cast %117 : vector<1x16x112xbf16> to vector<16x112xbf16>
    %cst_33 = arith.constant dense<0.000000e+00> : vector<2x112xf32>
    %119 = tpu.matmul %34, %118, %cst_33 {dimension_numbers = #tpu.dot_dimension_numbers<[1], [0], [0], [1], [0, 0, 1, 1], [], []>} : vector<2x16xbf16>, vector<16x112xbf16>, vector<2x112xf32> -> vector<2x112xf32>
    %120 = arith.addf %116, %119 : vector<2x112xf32>
    %cst_34 = arith.constant 0.000000e+00 : f32
    %121 = vector.broadcast %cst_34 : f32 to vector<2x112xf32>
    %122 = arith.cmpf oge, %120, %121 : vector<2x112xf32>
    %cst_35 = arith.constant 2.000000e-01 : f32
    %123 = vector.broadcast %cst_35 : f32 to vector<2x112xf32>
    %124 = arith.mulf %123, %120 : vector<2x112xf32>
    %125 = arith.select %122, %120, %124 : vector<2x112xi1>, vector<2x112xf32>
    %126 = arith.truncf %125 : vector<2x112xf32> to vector<2x112xbf16>
    %c0_36 = arith.constant 0 : index
    %c0_37 = arith.constant 0 : index
    %c0_38 = arith.constant 0 : index
    %127 = vector.load %arg2[%c0_36, %c0_37, %c0_38] : memref<3x16x112xbf16, #tpu.memory_space<vmem>>, vector<1x16x112xbf16>
    %128 = vector.shape_cast %127 : vector<1x16x112xbf16> to vector<16x112xbf16>
    %cst_39 = arith.constant dense<0.000000e+00> : vector<2x112xf32>
    %129 = tpu.matmul %34, %128, %cst_39 {dimension_numbers = #tpu.dot_dimension_numbers<[1], [0], [0], [1], [0, 0, 1, 1], [], []>} : vector<2x16xbf16>, vector<16x112xbf16>, vector<2x112xf32> -> vector<2x112xf32>
    %130 = vector.broadcast %107 : vector<1x112xf32> to vector<2x112xf32>
    %131 = arith.addf %130, %129 : vector<2x112xf32>
    %c1_40 = arith.constant 1 : index
    %c0_41 = arith.constant 0 : index
    %c0_42 = arith.constant 0 : index
    %132 = vector.load %arg2[%c1_40, %c0_41, %c0_42] : memref<3x16x112xbf16, #tpu.memory_space<vmem>>, vector<1x16x112xbf16>
    %133 = vector.shape_cast %132 : vector<1x16x112xbf16> to vector<16x112xbf16>
    %cst_43 = arith.constant dense<0.000000e+00> : vector<2x112xf32>
    %134 = tpu.matmul %40, %133, %cst_43 {dimension_numbers = #tpu.dot_dimension_numbers<[1], [0], [0], [1], [0, 0, 1, 1], [], []>} : vector<2x16xbf16>, vector<16x112xbf16>, vector<2x112xf32> -> vector<2x112xf32>
    %135 = arith.addf %131, %134 : vector<2x112xf32>
    %c2_44 = arith.constant 2 : index
    %c0_45 = arith.constant 0 : index
    %c0_46 = arith.constant 0 : index
    %136 = vector.load %arg2[%c2_44, %c0_45, %c0_46] : memref<3x16x112xbf16, #tpu.memory_space<vmem>>, vector<1x16x112xbf16>
    %137 = vector.shape_cast %136 : vector<1x16x112xbf16> to vector<16x112xbf16>
    %cst_47 = arith.constant dense<0.000000e+00> : vector<2x112xf32>
    %138 = tpu.matmul %46, %137, %cst_47 {dimension_numbers = #tpu.dot_dimension_numbers<[1], [0], [0], [1], [0, 0, 1, 1], [], []>} : vector<2x16xbf16>, vector<16x112xbf16>, vector<2x112xf32> -> vector<2x112xf32>
    %139 = arith.addf %135, %138 : vector<2x112xf32>
    %cst_48 = arith.constant 0.000000e+00 : f32
    %140 = vector.broadcast %cst_48 : f32 to vector<2x112xf32>
    %141 = arith.cmpf oge, %139, %140 : vector<2x112xf32>
    %cst_49 = arith.constant 2.000000e-01 : f32
    %142 = vector.broadcast %cst_49 : f32 to vector<2x112xf32>
    %143 = arith.mulf %142, %139 : vector<2x112xf32>
    %144 = arith.select %141, %139, %143 : vector<2x112xi1>, vector<2x112xf32>
    %145 = arith.truncf %144 : vector<2x112xf32> to vector<2x112xbf16>
    %c0_50 = arith.constant 0 : index
    %c0_51 = arith.constant 0 : index
    %c0_52 = arith.constant 0 : index
    %146 = vector.load %arg2[%c0_50, %c0_51, %c0_52] : memref<3x16x112xbf16, #tpu.memory_space<vmem>>, vector<1x16x112xbf16>
    %147 = vector.shape_cast %146 : vector<1x16x112xbf16> to vector<16x112xbf16>
    %cst_53 = arith.constant dense<0.000000e+00> : vector<2x112xf32>
    %148 = tpu.matmul %46, %147, %cst_53 {dimension_numbers = #tpu.dot_dimension_numbers<[1], [0], [0], [1], [0, 0, 1, 1], [], []>} : vector<2x16xbf16>, vector<16x112xbf16>, vector<2x112xf32> -> vector<2x112xf32>
    %149 = vector.broadcast %107 : vector<1x112xf32> to vector<2x112xf32>
    %150 = arith.addf %149, %148 : vector<2x112xf32>
    %c1_54 = arith.constant 1 : index
    %c0_55 = arith.constant 0 : index
    %c0_56 = arith.constant 0 : index
    %151 = vector.load %arg2[%c1_54, %c0_55, %c0_56] : memref<3x16x112xbf16, #tpu.memory_space<vmem>>, vector<1x16x112xbf16>
    %152 = vector.shape_cast %151 : vector<1x16x112xbf16> to vector<16x112xbf16>
    %cst_57 = arith.constant dense<0.000000e+00> : vector<2x112xf32>
    %153 = tpu.matmul %52, %152, %cst_57 {dimension_numbers = #tpu.dot_dimension_numbers<[1], [0], [0], [1], [0, 0, 1, 1], [], []>} : vector<2x16xbf16>, vector<16x112xbf16>, vector<2x112xf32> -> vector<2x112xf32>
    %154 = arith.addf %150, %153 : vector<2x112xf32>
    %c2_58 = arith.constant 2 : index
    %c0_59 = arith.constant 0 : index
    %c0_60 = arith.constant 0 : index
    %155 = vector.load %arg2[%c2_58, %c0_59, %c0_60] : memref<3x16x112xbf16, #tpu.memory_space<vmem>>, vector<1x16x112xbf16>
    %156 = vector.shape_cast %155 : vector<1x16x112xbf16> to vector<16x112xbf16>
    %cst_61 = arith.constant dense<0.000000e+00> : vector<2x112xf32>
    %157 = tpu.matmul %58, %156, %cst_61 {dimension_numbers = #tpu.dot_dimension_numbers<[1], [0], [0], [1], [0, 0, 1, 1], [], []>} : vector<2x16xbf16>, vector<16x112xbf16>, vector<2x112xf32> -> vector<2x112xf32>
    %158 = arith.addf %154, %157 : vector<2x112xf32>
    %cst_62 = arith.constant 0.000000e+00 : f32
    %159 = vector.broadcast %cst_62 : f32 to vector<2x112xf32>
    %160 = arith.cmpf oge, %158, %159 : vector<2x112xf32>
    %cst_63 = arith.constant 2.000000e-01 : f32
    %161 = vector.broadcast %cst_63 : f32 to vector<2x112xf32>
    %162 = arith.mulf %161, %158 : vector<2x112xf32>
    %163 = arith.select %160, %158, %162 : vector<2x112xi1>, vector<2x112xf32>
    %164 = arith.truncf %163 : vector<2x112xf32> to vector<2x112xbf16>
    %c0_64 = arith.constant 0 : index
    %c0_65 = arith.constant 0 : index
    %c0_66 = arith.constant 0 : index
    %165 = vector.load %arg2[%c0_64, %c0_65, %c0_66] : memref<3x16x112xbf16, #tpu.memory_space<vmem>>, vector<1x16x112xbf16>
    %166 = vector.shape_cast %165 : vector<1x16x112xbf16> to vector<16x112xbf16>
    %cst_67 = arith.constant dense<0.000000e+00> : vector<2x112xf32>
    %167 = tpu.matmul %58, %166, %cst_67 {dimension_numbers = #tpu.dot_dimension_numbers<[1], [0], [0], [1], [0, 0, 1, 1], [], []>} : vector<2x16xbf16>, vector<16x112xbf16>, vector<2x112xf32> -> vector<2x112xf32>
    %168 = vector.broadcast %107 : vector<1x112xf32> to vector<2x112xf32>
    %169 = arith.addf %168, %167 : vector<2x112xf32>
    %c1_68 = arith.constant 1 : index
    %c0_69 = arith.constant 0 : index
    %c0_70 = arith.constant 0 : index
    %170 = vector.load %arg2[%c1_68, %c0_69, %c0_70] : memref<3x16x112xbf16, #tpu.memory_space<vmem>>, vector<1x16x112xbf16>
    %171 = vector.shape_cast %170 : vector<1x16x112xbf16> to vector<16x112xbf16>
    %cst_71 = arith.constant dense<0.000000e+00> : vector<2x112xf32>
    %172 = tpu.matmul %64, %171, %cst_71 {dimension_numbers = #tpu.dot_dimension_numbers<[1], [0], [0], [1], [0, 0, 1, 1], [], []>} : vector<2x16xbf16>, vector<16x112xbf16>, vector<2x112xf32> -> vector<2x112xf32>
    %173 = arith.addf %169, %172 : vector<2x112xf32>
    %c2_72 = arith.constant 2 : index
    %c0_73 = arith.constant 0 : index
    %c0_74 = arith.constant 0 : index
    %174 = vector.load %arg2[%c2_72, %c0_73, %c0_74] : memref<3x16x112xbf16, #tpu.memory_space<vmem>>, vector<1x16x112xbf16>
    %175 = vector.shape_cast %174 : vector<1x16x112xbf16> to vector<16x112xbf16>
    %cst_75 = arith.constant dense<0.000000e+00> : vector<2x112xf32>
    %176 = tpu.matmul %70, %175, %cst_75 {dimension_numbers = #tpu.dot_dimension_numbers<[1], [0], [0], [1], [0, 0, 1, 1], [], []>} : vector<2x16xbf16>, vector<16x112xbf16>, vector<2x112xf32> -> vector<2x112xf32>
    %177 = arith.addf %173, %176 : vector<2x112xf32>
    %cst_76 = arith.constant 0.000000e+00 : f32
    %178 = vector.broadcast %cst_76 : f32 to vector<2x112xf32>
    %179 = arith.cmpf oge, %177, %178 : vector<2x112xf32>
    %cst_77 = arith.constant 2.000000e-01 : f32
    %180 = vector.broadcast %cst_77 : f32 to vector<2x112xf32>
    %181 = arith.mulf %180, %177 : vector<2x112xf32>
    %182 = arith.select %179, %177, %181 : vector<2x112xi1>, vector<2x112xf32>
    %183 = arith.truncf %182 : vector<2x112xf32> to vector<2x112xbf16>
    %c0_78 = arith.constant 0 : index
    %c0_79 = arith.constant 0 : index
    %c0_80 = arith.constant 0 : index
    %184 = vector.load %arg2[%c0_78, %c0_79, %c0_80] : memref<3x16x112xbf16, #tpu.memory_space<vmem>>, vector<1x16x112xbf16>
    %185 = vector.shape_cast %184 : vector<1x16x112xbf16> to vector<16x112xbf16>
    %cst_81 = arith.constant dense<0.000000e+00> : vector<2x112xf32>
    %186 = tpu.matmul %70, %185, %cst_81 {dimension_numbers = #tpu.dot_dimension_numbers<[1], [0], [0], [1], [0, 0, 1, 1], [], []>} : vector<2x16xbf16>, vector<16x112xbf16>, vector<2x112xf32> -> vector<2x112xf32>
    %187 = vector.broadcast %107 : vector<1x112xf32> to vector<2x112xf32>
    %188 = arith.addf %187, %186 : vector<2x112xf32>
    %c1_82 = arith.constant 1 : index
    %c0_83 = arith.constant 0 : index
    %c0_84 = arith.constant 0 : index
    %189 = vector.load %arg2[%c1_82, %c0_83, %c0_84] : memref<3x16x112xbf16, #tpu.memory_space<vmem>>, vector<1x16x112xbf16>
    %190 = vector.shape_cast %189 : vector<1x16x112xbf16> to vector<16x112xbf16>
    %cst_85 = arith.constant dense<0.000000e+00> : vector<2x112xf32>
    %191 = tpu.matmul %76, %190, %cst_85 {dimension_numbers = #tpu.dot_dimension_numbers<[1], [0], [0], [1], [0, 0, 1, 1], [], []>} : vector<2x16xbf16>, vector<16x112xbf16>, vector<2x112xf32> -> vector<2x112xf32>
    %192 = arith.addf %188, %191 : vector<2x112xf32>
    %c2_86 = arith.constant 2 : index
    %c0_87 = arith.constant 0 : index
    %c0_88 = arith.constant 0 : index
    %193 = vector.load %arg2[%c2_86, %c0_87, %c0_88] : memref<3x16x112xbf16, #tpu.memory_space<vmem>>, vector<1x16x112xbf16>
    %194 = vector.shape_cast %193 : vector<1x16x112xbf16> to vector<16x112xbf16>
    %cst_89 = arith.constant dense<0.000000e+00> : vector<2x112xf32>
    %195 = tpu.matmul %82, %194, %cst_89 {dimension_numbers = #tpu.dot_dimension_numbers<[1], [0], [0], [1], [0, 0, 1, 1], [], []>} : vector<2x16xbf16>, vector<16x112xbf16>, vector<2x112xf32> -> vector<2x112xf32>
    %196 = arith.addf %192, %195 : vector<2x112xf32>
    %cst_90 = arith.constant 0.000000e+00 : f32
    %197 = vector.broadcast %cst_90 : f32 to vector<2x112xf32>
    %198 = arith.cmpf oge, %196, %197 : vector<2x112xf32>
    %cst_91 = arith.constant 2.000000e-01 : f32
    %199 = vector.broadcast %cst_91 : f32 to vector<2x112xf32>
    %200 = arith.mulf %199, %196 : vector<2x112xf32>
    %201 = arith.select %198, %196, %200 : vector<2x112xi1>, vector<2x112xf32>
    %202 = arith.truncf %201 : vector<2x112xf32> to vector<2x112xbf16>
    %c0_92 = arith.constant 0 : index
    %c0_93 = arith.constant 0 : index
    %c0_94 = arith.constant 0 : index
    %203 = vector.load %arg2[%c0_92, %c0_93, %c0_94] : memref<3x16x112xbf16, #tpu.memory_space<vmem>>, vector<1x16x112xbf16>
    %204 = vector.shape_cast %203 : vector<1x16x112xbf16> to vector<16x112xbf16>
    %cst_95 = arith.constant dense<0.000000e+00> : vector<2x112xf32>
    %205 = tpu.matmul %82, %204, %cst_95 {dimension_numbers = #tpu.dot_dimension_numbers<[1], [0], [0], [1], [0, 0, 1, 1], [], []>} : vector<2x16xbf16>, vector<16x112xbf16>, vector<2x112xf32> -> vector<2x112xf32>
    %206 = vector.broadcast %107 : vector<1x112xf32> to vector<2x112xf32>
    %207 = arith.addf %206, %205 : vector<2x112xf32>
    %c1_96 = arith.constant 1 : index
    %c0_97 = arith.constant 0 : index
    %c0_98 = arith.constant 0 : index
    %208 = vector.load %arg2[%c1_96, %c0_97, %c0_98] : memref<3x16x112xbf16, #tpu.memory_space<vmem>>, vector<1x16x112xbf16>
    %209 = vector.shape_cast %208 : vector<1x16x112xbf16> to vector<16x112xbf16>
    %cst_99 = arith.constant dense<0.000000e+00> : vector<2x112xf32>
    %210 = tpu.matmul %88, %209, %cst_99 {dimension_numbers = #tpu.dot_dimension_numbers<[1], [0], [0], [1], [0, 0, 1, 1], [], []>} : vector<2x16xbf16>, vector<16x112xbf16>, vector<2x112xf32> -> vector<2x112xf32>
    %211 = arith.addf %207, %210 : vector<2x112xf32>
    %c2_100 = arith.constant 2 : index
    %c0_101 = arith.constant 0 : index
    %c0_102 = arith.constant 0 : index
    %212 = vector.load %arg2[%c2_100, %c0_101, %c0_102] : memref<3x16x112xbf16, #tpu.memory_space<vmem>>, vector<1x16x112xbf16>
    %213 = vector.shape_cast %212 : vector<1x16x112xbf16> to vector<16x112xbf16>
    %cst_103 = arith.constant dense<0.000000e+00> : vector<2x112xf32>
    %214 = tpu.matmul %94, %213, %cst_103 {dimension_numbers = #tpu.dot_dimension_numbers<[1], [0], [0], [1], [0, 0, 1, 1], [], []>} : vector<2x16xbf16>, vector<16x112xbf16>, vector<2x112xf32> -> vector<2x112xf32>
    %215 = arith.addf %211, %214 : vector<2x112xf32>
    %cst_104 = arith.constant 0.000000e+00 : f32
    %216 = vector.broadcast %cst_104 : f32 to vector<2x112xf32>
    %217 = arith.cmpf oge, %215, %216 : vector<2x112xf32>
    %cst_105 = arith.constant 2.000000e-01 : f32
    %218 = vector.broadcast %cst_105 : f32 to vector<2x112xf32>
    %219 = arith.mulf %218, %215 : vector<2x112xf32>
    %220 = arith.select %217, %215, %219 : vector<2x112xi1>, vector<2x112xf32>
    %221 = arith.truncf %220 : vector<2x112xf32> to vector<2x112xbf16>
    %c0_106 = arith.constant 0 : index
    %c0_107 = arith.constant 0 : index
    %c0_108 = arith.constant 0 : index
    %222 = vector.load %arg2[%c0_106, %c0_107, %c0_108] : memref<3x16x112xbf16, #tpu.memory_space<vmem>>, vector<1x16x112xbf16>
    %223 = vector.shape_cast %222 : vector<1x16x112xbf16> to vector<16x112xbf16>
    %cst_109 = arith.constant dense<0.000000e+00> : vector<2x112xf32>
    %224 = tpu.matmul %94, %223, %cst_109 {dimension_numbers = #tpu.dot_dimension_numbers<[1], [0], [0], [1], [0, 0, 1, 1], [], []>} : vector<2x16xbf16>, vector<16x112xbf16>, vector<2x112xf32> -> vector<2x112xf32>
    %225 = vector.broadcast %107 : vector<1x112xf32> to vector<2x112xf32>
    %226 = arith.addf %225, %224 : vector<2x112xf32>
    %c1_110 = arith.constant 1 : index
    %c0_111 = arith.constant 0 : index
    %c0_112 = arith.constant 0 : index
    %227 = vector.load %arg2[%c1_110, %c0_111, %c0_112] : memref<3x16x112xbf16, #tpu.memory_space<vmem>>, vector<1x16x112xbf16>
    %228 = vector.shape_cast %227 : vector<1x16x112xbf16> to vector<16x112xbf16>
    %cst_113 = arith.constant dense<0.000000e+00> : vector<2x112xf32>
    %229 = tpu.matmul %100, %228, %cst_113 {dimension_numbers = #tpu.dot_dimension_numbers<[1], [0], [0], [1], [0, 0, 1, 1], [], []>} : vector<2x16xbf16>, vector<16x112xbf16>, vector<2x112xf32> -> vector<2x112xf32>
    %230 = arith.addf %226, %229 : vector<2x112xf32>
    %c2_114 = arith.constant 2 : index
    %c0_115 = arith.constant 0 : index
    %c0_116 = arith.constant 0 : index
    %231 = vector.load %arg2[%c2_114, %c0_115, %c0_116] : memref<3x16x112xbf16, #tpu.memory_space<vmem>>, vector<1x16x112xbf16>
    %232 = vector.shape_cast %231 : vector<1x16x112xbf16> to vector<16x112xbf16>
    %cst_117 = arith.constant dense<0.000000e+00> : vector<2x112xf32>
    %233 = tpu.matmul %106, %232, %cst_117 {dimension_numbers = #tpu.dot_dimension_numbers<[1], [0], [0], [1], [0, 0, 1, 1], [], []>} : vector<2x16xbf16>, vector<16x112xbf16>, vector<2x112xf32> -> vector<2x112xf32>
    %234 = arith.addf %230, %233 : vector<2x112xf32>
    %cst_118 = arith.constant 0.000000e+00 : f32
    %235 = vector.broadcast %cst_118 : f32 to vector<2x112xf32>
    %236 = arith.cmpf oge, %234, %235 : vector<2x112xf32>
    %cst_119 = arith.constant 2.000000e-01 : f32
    %237 = vector.broadcast %cst_119 : f32 to vector<2x112xf32>
    %238 = arith.mulf %237, %234 : vector<2x112xf32>
    %239 = arith.select %236, %234, %238 : vector<2x112xi1>, vector<2x112xf32>
    %240 = arith.truncf %239 : vector<2x112xf32> to vector<2x112xbf16>
    %c0_120 = arith.constant 0 : index
    %c0_121 = arith.constant 0 : index
    %241 = vector.load %arg5[%c0_120, %c0_121] : memref<1x96xf32, #tpu.memory_space<vmem>>, vector<1x96xf32>
    %c0_122 = arith.constant 0 : index
    %c0_123 = arith.constant 0 : index
    %c0_124 = arith.constant 0 : index
    %242 = vector.load %arg4[%c0_122, %c0_123, %c0_124] : memref<3x112x96xbf16, #tpu.memory_space<vmem>>, vector<1x112x96xbf16>
    %243 = vector.shape_cast %242 : vector<1x112x96xbf16> to vector<112x96xbf16>
    %cst_125 = arith.constant dense<0.000000e+00> : vector<2x96xf32>
    %244 = tpu.matmul %126, %243, %cst_125 {dimension_numbers = #tpu.dot_dimension_numbers<[1], [0], [0], [1], [0, 0, 1, 1], [], []>} : vector<2x112xbf16>, vector<112x96xbf16>, vector<2x96xf32> -> vector<2x96xf32>
    %245 = vector.broadcast %241 : vector<1x96xf32> to vector<2x96xf32>
    %246 = arith.addf %245, %244 : vector<2x96xf32>
    %c1_126 = arith.constant 1 : index
    %c0_127 = arith.constant 0 : index
    %c0_128 = arith.constant 0 : index
    %247 = vector.load %arg4[%c1_126, %c0_127, %c0_128] : memref<3x112x96xbf16, #tpu.memory_space<vmem>>, vector<1x112x96xbf16>
    %248 = vector.shape_cast %247 : vector<1x112x96xbf16> to vector<112x96xbf16>
    %cst_129 = arith.constant dense<0.000000e+00> : vector<2x96xf32>
    %249 = tpu.matmul %145, %248, %cst_129 {dimension_numbers = #tpu.dot_dimension_numbers<[1], [0], [0], [1], [0, 0, 1, 1], [], []>} : vector<2x112xbf16>, vector<112x96xbf16>, vector<2x96xf32> -> vector<2x96xf32>
    %250 = arith.addf %246, %249 : vector<2x96xf32>
    %c2_130 = arith.constant 2 : index
    %c0_131 = arith.constant 0 : index
    %c0_132 = arith.constant 0 : index
    %251 = vector.load %arg4[%c2_130, %c0_131, %c0_132] : memref<3x112x96xbf16, #tpu.memory_space<vmem>>, vector<1x112x96xbf16>
    %252 = vector.shape_cast %251 : vector<1x112x96xbf16> to vector<112x96xbf16>
    %cst_133 = arith.constant dense<0.000000e+00> : vector<2x96xf32>
    %253 = tpu.matmul %164, %252, %cst_133 {dimension_numbers = #tpu.dot_dimension_numbers<[1], [0], [0], [1], [0, 0, 1, 1], [], []>} : vector<2x112xbf16>, vector<112x96xbf16>, vector<2x96xf32> -> vector<2x96xf32>
    %254 = arith.addf %250, %253 : vector<2x96xf32>
    %cst_134 = arith.constant 0.000000e+00 : f32
    %255 = vector.broadcast %cst_134 : f32 to vector<2x96xf32>
    %256 = arith.cmpf oge, %254, %255 : vector<2x96xf32>
    %cst_135 = arith.constant 2.000000e-01 : f32
    %257 = vector.broadcast %cst_135 : f32 to vector<2x96xf32>
    %258 = arith.mulf %257, %254 : vector<2x96xf32>
    %259 = arith.select %256, %254, %258 : vector<2x96xi1>, vector<2x96xf32>
    %260 = arith.truncf %259 : vector<2x96xf32> to vector<2x96xbf16>
    %c0_136 = arith.constant 0 : index
    %c0_137 = arith.constant 0 : index
    %c0_138 = arith.constant 0 : index
    %261 = vector.load %arg4[%c0_136, %c0_137, %c0_138] : memref<3x112x96xbf16, #tpu.memory_space<vmem>>, vector<1x112x96xbf16>
    %262 = vector.shape_cast %261 : vector<1x112x96xbf16> to vector<112x96xbf16>
    %cst_139 = arith.constant dense<0.000000e+00> : vector<2x96xf32>
    %263 = tpu.matmul %164, %262, %cst_139 {dimension_numbers = #tpu.dot_dimension_numbers<[1], [0], [0], [1], [0, 0, 1, 1], [], []>} : vector<2x112xbf16>, vector<112x96xbf16>, vector<2x96xf32> -> vector<2x96xf32>
    %264 = vector.broadcast %241 : vector<1x96xf32> to vector<2x96xf32>
    %265 = arith.addf %264, %263 : vector<2x96xf32>
    %c1_140 = arith.constant 1 : index
    %c0_141 = arith.constant 0 : index
    %c0_142 = arith.constant 0 : index
    %266 = vector.load %arg4[%c1_140, %c0_141, %c0_142] : memref<3x112x96xbf16, #tpu.memory_space<vmem>>, vector<1x112x96xbf16>
    %267 = vector.shape_cast %266 : vector<1x112x96xbf16> to vector<112x96xbf16>
    %cst_143 = arith.constant dense<0.000000e+00> : vector<2x96xf32>
    %268 = tpu.matmul %183, %267, %cst_143 {dimension_numbers = #tpu.dot_dimension_numbers<[1], [0], [0], [1], [0, 0, 1, 1], [], []>} : vector<2x112xbf16>, vector<112x96xbf16>, vector<2x96xf32> -> vector<2x96xf32>
    %269 = arith.addf %265, %268 : vector<2x96xf32>
    %c2_144 = arith.constant 2 : index
    %c0_145 = arith.constant 0 : index
    %c0_146 = arith.constant 0 : index
    %270 = vector.load %arg4[%c2_144, %c0_145, %c0_146] : memref<3x112x96xbf16, #tpu.memory_space<vmem>>, vector<1x112x96xbf16>
    %271 = vector.shape_cast %270 : vector<1x112x96xbf16> to vector<112x96xbf16>
    %cst_147 = arith.constant dense<0.000000e+00> : vector<2x96xf32>
    %272 = tpu.matmul %202, %271, %cst_147 {dimension_numbers = #tpu.dot_dimension_numbers<[1], [0], [0], [1], [0, 0, 1, 1], [], []>} : vector<2x112xbf16>, vector<112x96xbf16>, vector<2x96xf32> -> vector<2x96xf32>
    %273 = arith.addf %269, %272 : vector<2x96xf32>
    %cst_148 = arith.constant 0.000000e+00 : f32
    %274 = vector.broadcast %cst_148 : f32 to vector<2x96xf32>
    %275 = arith.cmpf oge, %273, %274 : vector<2x96xf32>
    %cst_149 = arith.constant 2.000000e-01 : f32
    %276 = vector.broadcast %cst_149 : f32 to vector<2x96xf32>
    %277 = arith.mulf %276, %273 : vector<2x96xf32>
    %278 = arith.select %275, %273, %277 : vector<2x96xi1>, vector<2x96xf32>
    %279 = arith.truncf %278 : vector<2x96xf32> to vector<2x96xbf16>
    %c0_150 = arith.constant 0 : index
    %c0_151 = arith.constant 0 : index
    %c0_152 = arith.constant 0 : index
    %280 = vector.load %arg4[%c0_150, %c0_151, %c0_152] : memref<3x112x96xbf16, #tpu.memory_space<vmem>>, vector<1x112x96xbf16>
    %281 = vector.shape_cast %280 : vector<1x112x96xbf16> to vector<112x96xbf16>
    %cst_153 = arith.constant dense<0.000000e+00> : vector<2x96xf32>
    %282 = tpu.matmul %202, %281, %cst_153 {dimension_numbers = #tpu.dot_dimension_numbers<[1], [0], [0], [1], [0, 0, 1, 1], [], []>} : vector<2x112xbf16>, vector<112x96xbf16>, vector<2x96xf32> -> vector<2x96xf32>
    %283 = vector.broadcast %241 : vector<1x96xf32> to vector<2x96xf32>
    %284 = arith.addf %283, %282 : vector<2x96xf32>
    %c1_154 = arith.constant 1 : index
    %c0_155 = arith.constant 0 : index
    %c0_156 = arith.constant 0 : index
    %285 = vector.load %arg4[%c1_154, %c0_155, %c0_156] : memref<3x112x96xbf16, #tpu.memory_space<vmem>>, vector<1x112x96xbf16>
    %286 = vector.shape_cast %285 : vector<1x112x96xbf16> to vector<112x96xbf16>
    %cst_157 = arith.constant dense<0.000000e+00> : vector<2x96xf32>
    %287 = tpu.matmul %221, %286, %cst_157 {dimension_numbers = #tpu.dot_dimension_numbers<[1], [0], [0], [1], [0, 0, 1, 1], [], []>} : vector<2x112xbf16>, vector<112x96xbf16>, vector<2x96xf32> -> vector<2x96xf32>
    %288 = arith.addf %284, %287 : vector<2x96xf32>
    %c2_158 = arith.constant 2 : index
    %c0_159 = arith.constant 0 : index
    %c0_160 = arith.constant 0 : index
    %289 = vector.load %arg4[%c2_158, %c0_159, %c0_160] : memref<3x112x96xbf16, #tpu.memory_space<vmem>>, vector<1x112x96xbf16>
    %290 = vector.shape_cast %289 : vector<1x112x96xbf16> to vector<112x96xbf16>
    %cst_161 = arith.constant dense<0.000000e+00> : vector<2x96xf32>
    %291 = tpu.matmul %240, %290, %cst_161 {dimension_numbers = #tpu.dot_dimension_numbers<[1], [0], [0], [1], [0, 0, 1, 1], [], []>} : vector<2x112xbf16>, vector<112x96xbf16>, vector<2x96xf32> -> vector<2x96xf32>
    %292 = arith.addf %288, %291 : vector<2x96xf32>
    %cst_162 = arith.constant 0.000000e+00 : f32
    %293 = vector.broadcast %cst_162 : f32 to vector<2x96xf32>
    %294 = arith.cmpf oge, %292, %293 : vector<2x96xf32>
    %cst_163 = arith.constant 2.000000e-01 : f32
    %295 = vector.broadcast %cst_163 : f32 to vector<2x96xf32>
    %296 = arith.mulf %295, %292 : vector<2x96xf32>
    %297 = arith.select %294, %292, %296 : vector<2x96xi1>, vector<2x96xf32>
    %298 = arith.truncf %297 : vector<2x96xf32> to vector<2x96xbf16>
    %c0_164 = arith.constant 0 : index
    %c0_165 = arith.constant 0 : index
    %299 = vector.load %arg7[%c0_164, %c0_165] : memref<1x64xf32, #tpu.memory_space<vmem>>, vector<1x64xf32>
    %c0_166 = arith.constant 0 : index
    %c0_167 = arith.constant 0 : index
    %c0_168 = arith.constant 0 : index
    %300 = vector.load %arg6[%c0_166, %c0_167, %c0_168] : memref<3x96x64xbf16, #tpu.memory_space<vmem>>, vector<1x96x64xbf16>
    %301 = vector.shape_cast %300 : vector<1x96x64xbf16> to vector<96x64xbf16>
    %cst_169 = arith.constant dense<0.000000e+00> : vector<2x64xf32>
    %302 = tpu.matmul %260, %301, %cst_169 {dimension_numbers = #tpu.dot_dimension_numbers<[1], [0], [0], [1], [0, 0, 1, 1], [], []>} : vector<2x96xbf16>, vector<96x64xbf16>, vector<2x64xf32> -> vector<2x64xf32>
    %303 = vector.broadcast %299 : vector<1x64xf32> to vector<2x64xf32>
    %304 = arith.addf %303, %302 : vector<2x64xf32>
    %c1_170 = arith.constant 1 : index
    %c0_171 = arith.constant 0 : index
    %c0_172 = arith.constant 0 : index
    %305 = vector.load %arg6[%c1_170, %c0_171, %c0_172] : memref<3x96x64xbf16, #tpu.memory_space<vmem>>, vector<1x96x64xbf16>
    %306 = vector.shape_cast %305 : vector<1x96x64xbf16> to vector<96x64xbf16>
    %cst_173 = arith.constant dense<0.000000e+00> : vector<2x64xf32>
    %307 = tpu.matmul %279, %306, %cst_173 {dimension_numbers = #tpu.dot_dimension_numbers<[1], [0], [0], [1], [0, 0, 1, 1], [], []>} : vector<2x96xbf16>, vector<96x64xbf16>, vector<2x64xf32> -> vector<2x64xf32>
    %308 = arith.addf %304, %307 : vector<2x64xf32>
    %c2_174 = arith.constant 2 : index
    %c0_175 = arith.constant 0 : index
    %c0_176 = arith.constant 0 : index
    %309 = vector.load %arg6[%c2_174, %c0_175, %c0_176] : memref<3x96x64xbf16, #tpu.memory_space<vmem>>, vector<1x96x64xbf16>
    %310 = vector.shape_cast %309 : vector<1x96x64xbf16> to vector<96x64xbf16>
    %cst_177 = arith.constant dense<0.000000e+00> : vector<2x64xf32>
    %311 = tpu.matmul %298, %310, %cst_177 {dimension_numbers = #tpu.dot_dimension_numbers<[1], [0], [0], [1], [0, 0, 1, 1], [], []>} : vector<2x96xbf16>, vector<96x64xbf16>, vector<2x64xf32> -> vector<2x64xf32>
    %312 = arith.addf %308, %311 : vector<2x64xf32>
    %cst_178 = arith.constant 0.000000e+00 : f32
    %313 = vector.broadcast %cst_178 : f32 to vector<2x64xf32>
    %314 = arith.cmpf oge, %312, %313 : vector<2x64xf32>
    %cst_179 = arith.constant 2.000000e-01 : f32
    %315 = vector.broadcast %cst_179 : f32 to vector<2x64xf32>
    %316 = arith.mulf %315, %312 : vector<2x64xf32>
    %317 = arith.select %314, %312, %316 : vector<2x64xi1>, vector<2x64xf32>
    %c0_180 = arith.constant 0 : index
    %c0_181 = arith.constant 0 : index
    %318 = vector.load %arg8[%c0_180, %c0_181] : memref<1x64xf32, #tpu.memory_space<vmem>>, vector<1x64xf32>
    %319 = vector.broadcast %318 : vector<1x64xf32> to vector<2x64xf32>
    %320 = arith.mulf %317, %319 : vector<2x64xf32>
    %cst_182 = arith.constant dense<0.000000e+00> : vector<2xf32>
    %321 = vector.multi_reduction <add>, %320, %cst_182 [1] : vector<2x64xf32> to vector<2xf32>
    %322 = vector.shape_cast %321 : vector<2xf32> to vector<2x1xf32>
    %c0_183 = arith.constant 0 : index
    %c0_184 = arith.constant 0 : index
    %323 = vector.load %arg9[%c0_183, %c0_184] : memref<1x1xf32, #tpu.memory_space<vmem>>, vector<1x1xf32>
    %324 = vector.broadcast %323 : vector<1x1xf32> to vector<2x1xf32>
    %325 = arith.addf %322, %324 : vector<2x1xf32>
    %cst_185 = arith.constant 0.000000e+00 : f32
    %326 = vector.broadcast %cst_185 : f32 to vector<2x1xf32>
    %327 = arith.subf %326, %325 : vector<2x1xf32>
    %328 = math.exp %327 : vector<2x1xf32>
    %cst_186 = arith.constant 1.000000e+00 : f32
    %329 = vector.broadcast %cst_186 : f32 to vector<2x1xf32>
    %330 = arith.addf %329, %328 : vector<2x1xf32>
    %cst_187 = arith.constant 1.000000e+00 : f32
    %331 = vector.broadcast %cst_187 : f32 to vector<2x1xf32>
    %332 = arith.divf %331, %330 : vector<2x1xf32>
    %c0_188 = arith.constant 0 : index
    %c0_189 = arith.constant 0 : index
    %333 = vector.load %arg10[%c0_188, %c0_189] : memref<2x1xf32, #tpu.memory_space<vmem>>, vector<2x1xf32>
    tpu.vector_store %arg10[%c0_188, %c0_189], %332 {strides = array<i32>} : memref<2x1xf32, #tpu.memory_space<vmem>>, vector<2x1xf32>,
    return
  }
  func.func @transform_0(%arg0: i32) -> (i32, i32) {
    %c0_i32 = arith.constant 0 : i32
    %c0_i32_0 = arith.constant 0 : i32
    %c0_i32_1 = arith.constant 0 : i32
    return %c0_i32, %c0_i32_0 : i32, i32
  }
  func.func @transform_1(%arg0: i32) -> (i32, i32, i32) {
    %c0_i32 = arith.constant 0 : i32
    %c0_i32_0 = arith.constant 0 : i32
    %c0_i32_1 = arith.constant 0 : i32
    %c0_i32_2 = arith.constant 0 : i32
    return %c0_i32, %c0_i32_0, %c0_i32_1 : i32, i32, i32
  }
  func.func @transform_2(%arg0: i32) -> (i32, i32) {
    %c0_i32 = arith.constant 0 : i32
    %c0_i32_0 = arith.constant 0 : i32
    %c0_i32_1 = arith.constant 0 : i32
    return %c0_i32, %c0_i32_0 : i32, i32
  }
  func.func @transform_3(%arg0: i32) -> (i32, i32, i32) {
    %c0_i32 = arith.constant 0 : i32
    %c0_i32_0 = arith.constant 0 : i32
    %c0_i32_1 = arith.constant 0 : i32
    %c0_i32_2 = arith.constant 0 : i32
    return %c0_i32, %c0_i32_0, %c0_i32_1 : i32, i32, i32
  }
  func.func @transform_4(%arg0: i32) -> (i32, i32) {
    %c0_i32 = arith.constant 0 : i32
    %c0_i32_0 = arith.constant 0 : i32
    %c0_i32_1 = arith.constant 0 : i32
    return %c0_i32, %c0_i32_0 : i32, i32
  }
  func.func @transform_5(%arg0: i32) -> (i32, i32, i32) {
    %c0_i32 = arith.constant 0 : i32
    %c0_i32_0 = arith.constant 0 : i32
    %c0_i32_1 = arith.constant 0 : i32
    %c0_i32_2 = arith.constant 0 : i32
    return %c0_i32, %c0_i32_0, %c0_i32_1 : i32, i32, i32
  }
  func.func @transform_6(%arg0: i32) -> (i32, i32) {
    %c0_i32 = arith.constant 0 : i32
    %c0_i32_0 = arith.constant 0 : i32
    %c0_i32_1 = arith.constant 0 : i32
    return %c0_i32, %c0_i32_0 : i32, i32
  }
  func.func @transform_7(%arg0: i32) -> (i32, i32) {
    %c0_i32 = arith.constant 0 : i32
    %c0_i32_0 = arith.constant 0 : i32
    %c0_i32_1 = arith.constant 0 : i32
    return %c0_i32, %c0_i32_0 : i32, i32
  }
  func.func @transform_8(%arg0: i32) -> (i32, i32) {
    %c0_i32 = arith.constant 0 : i32
    %c0_i32_0 = arith.constant 0 : i32
    %c0_i32_1 = arith.constant 0 : i32
    return %c0_i32, %c0_i32_0 : i32, i32
  }
  func.func @transform_9(%arg0: i32) -> (i32, i32) {
    %c0_i32 = arith.constant 0 : i32
    %c0_i32_0 = arith.constant 0 : i32
    %c0_i32_1 = arith.constant 0 : i32
    return %c0_i32, %c0_i32_0 : i32, i32
  }
}

</mosaic_0001>

<llo_original>
// kernel: discriminator_forward.1
$region0: #{discriminator_forward.1}
  #allocation0 [shape = 'u32[]', space=smem, size = 0x4, offset = 0x4, fixed_abs, tag = 'smem constant byte address 0x4 - core index']
  #allocation1 [shape = 'u32[72,128]{1,0:T(1,128)}', space=vmem, size = 0x9000, scoped, tag = 'internal scratch']
  #allocation2 [shape = 'f32[1,1]{1,0:T(1,128)S(1)}', space=vmem, size = 0x200, scoped, tag = 'scoped memory for discriminator_forward.1']
  %s0 = inlined_call_operand.vmem [shape: f32[2,256], index: 0, kind: input, shape index: {}]
  %s1 = inlined_call_operand.vmem [shape: bf16[3,16,112], index: 1, kind: input, shape index: {}]
  %s2 = inlined_call_operand.vmem [shape: f32[1,112], index: 2, kind: input, shape index: {}]
  %s3 = inlined_call_operand.vmem [shape: bf16[3,112,96], index: 3, kind: input, shape index: {}]
  %s4 = inlined_call_operand.vmem [shape: f32[1,96], index: 4, kind: input, shape index: {}]
  %s5 = inlined_call_operand.vmem [shape: bf16[3,96,64], index: 5, kind: input, shape index: {}]
  %s6 = inlined_call_operand.vmem [shape: f32[1,64], index: 6, kind: input, shape index: {}]
  %s7 = inlined_call_operand.vmem [shape: f32[1,64], index: 7, kind: input, shape index: {}]
  %s8 = inlined_call_operand.<no memory space> [shape: f32[1,1], index: 8, kind: input, shape index: {}]
  %s9 = inlined_call_operand.vmem [shape: f32[2,1], index: 9, kind: output, shape index: {}]
  %s10 = sld [smem:[#allocation0]]
  $region46: #{discriminator_forward.1} parent=0
    _
  %s12 = ssub.s32 1, %s10
  %s13 = scalar_select 0, %s12, %s10
  %v14 = vstv %s8
  %15 = vst [vmem:[#allocation2] sm:$0x1] %v14
  // Predicated region
  $region2: #{discriminator_forward.1} parent=0 // pred_check
    _
  $region3: #{discriminator_forward.1} parent=0 // pred_check_branch
    %17 = sbr.rel (0) target = $region5
  $region4: #{discriminator_forward.1} parent=0 // pred_region
    _
  $region5: #{discriminator_forward.1} parent=0 // pred_fallthru
    _
  // Predicated region
  $region6: #{discriminator_forward.1} parent=0 // pred_check
    _
  $region7: #{discriminator_forward.1} parent=0 // pred_check_branch
    %19 = sbr.rel (0) target = $region9
  $region8: #{discriminator_forward.1} parent=0 // pred_region
    _
  $region9: #{discriminator_forward.1} parent=0 // pred_fallthru
    _
  // Predicated region
  $region10: #{discriminator_forward.1} parent=0 // pred_check
    _
  $region11: #{discriminator_forward.1} parent=0 // pred_check_branch
    %21 = sbr.rel (0) target = $region13
  $region12: #{discriminator_forward.1} parent=0 // pred_region
    _
  $region13: #{discriminator_forward.1} parent=0 // pred_fallthru
    _
  // Predicated region
  $region14: #{discriminator_forward.1} parent=0 // pred_check
    _
  $region15: #{discriminator_forward.1} parent=0 // pred_check_branch
    %23 = sbr.rel (0) target = $region17
  $region16: #{discriminator_forward.1} parent=0 // pred_region
    _
  $region17: #{discriminator_forward.1} parent=0 // pred_fallthru
    _
  // Predicated region
  $region18: #{discriminator_forward.1} parent=0 // pred_check
    _
  $region19: #{discriminator_forward.1} parent=0 // pred_check_branch
    %25 = sbr.rel (0) target = $region21
  $region20: #{discriminator_forward.1} parent=0 // pred_region
    _
  $region21: #{discriminator_forward.1} parent=0 // pred_fallthru
    _
  // Predicated region
  $region22: #{discriminator_forward.1} parent=0 // pred_check
    _
  $region23: #{discriminator_forward.1} parent=0 // pred_check_branch
    %27 = sbr.rel (0) target = $region25
  $region24: #{discriminator_forward.1} parent=0 // pred_region
    _
  $region25: #{discriminator_forward.1} parent=0 // pred_fallthru
    _
  // Predicated region
  $region26: #{discriminator_forward.1} parent=0 // pred_check
    _
  $region27: #{discriminator_forward.1} parent=0 // pred_check_branch
    %29 = sbr.rel (0) target = $region29
  $region28: #{discriminator_forward.1} parent=0 // pred_region
    _
  $region29: #{discriminator_forward.1} parent=0 // pred_fallthru
    _
  // Predicated region
  $region30: #{discriminator_forward.1} parent=0 // pred_check
    _
  $region31: #{discriminator_forward.1} parent=0 // pred_check_branch
    %31 = sbr.rel (0) target = $region33
  $region32: #{discriminator_forward.1} parent=0 // pred_region
    _
  $region33: #{discriminator_forward.1} parent=0 // pred_fallthru
    _
  // Predicated region
  $region34: #{discriminator_forward.1} parent=0 // pred_check
    _
  $region35: #{discriminator_forward.1} parent=0 // pred_check_branch
    %33 = sbr.rel (0) target = $region37
  $region36: #{discriminator_forward.1} parent=0 // pred_region
    _
  $region37: #{discriminator_forward.1} parent=0 // pred_fallthru
    _
  %v35 = vld [vmem:[%s0] sm:$0xf]
  %37 = vst [vmem:[#allocation1] ss:$4 sm:$0xff] %v35
  %v38 = vld.sshfl [vmem:[#allocation1] sm:$0xff pattern:$0x73625140]
  %v39 = vld.sshfl [vmem:[#allocation1 + $0x8] sm:$0xff pattern:$0x73625140]
  %vm42 = vcmask 1041408
  %v43 = vsel %vm42, %v38, 0.0
  %v44 = vsel %vm42, %v39, 0.0
  %v45 = vadd.f32 %v43, %v44
  %46 = vadd.xlane.f32.xlu0 %v45
  %v47 = vpop.xlane.xlu0 %46
  %v48 = vrcp.pop 256.0
  %v49 = vmul.f32 256.0, %v48
  %v50 = vsub.f32 1.0, %v49
  %v51 = vmul.f32 %v48, %v50
  %v52 = vadd.f32 %v48, %v51
  %vm53 = vweird.f32 %v48
  %v54 = vsel %vm53, %v48, %v52
  %v55 = vmul.f32 %v47, %v54
  %v58 = vunpack.c.l.s4 269488144
  %v59 = vunpack.c.0.s8 %v58
  %v60 = vperm.slane %v55, %v59
  %v62 = vsub.f32 %v35, %v60
  %v63 = vmul.f32 %v62, %v62
  %65 = vst [vmem:[#allocation1] ss:$4 sm:$0xff] %v63
  %v66 = vld.sshfl [vmem:[#allocation1] sm:$0xff pattern:$0x73625140]
  %v67 = vld.sshfl [vmem:[#allocation1 + $0x8] sm:$0xff pattern:$0x73625140]
  %v70 = vsel %vm42, %v66, 0.0
  %v71 = vsel %vm42, %v67, 0.0
  %v72 = vadd.f32 %v70, %v71
  %73 = vadd.xlane.f32.xlu0 %v72
  %v74 = vpop.xlane.xlu0 %73
  %v75 = vmul.f32 %v74, 0.003921569
  %vm76 = vcmp.gt.f32.partialorder %v75, 0.0
  %v77 = vrsqrt.pop %v75
  %v78 = vmul.f32 %v77, %v75
  %v79 = vmul.f32 %v78, %v77
  %v80 = vmul.f32 0.5, %v79
  %v81 = vsub.f32 1.5, %v80
  %v82 = vmul.f32 %v77, %v81
  %vm83 = vweird.f32 %v75
  %vm84 = vweird.f32 %v77
  %vm85 = vmor %vm83, %vm84
  %v86 = vsel %vm85, %v77, %v82
  %v87 = vsel %vm76, %v86, 0.0
  %v88 = vld [vmem:[%s0] sm:$0x3]
  %v89 = vsub.f32 %v88, %v55
  %v90 = vmul.f32 %v89, %v87
  %v91 = vpack.c.bf16 %v90, %v90
  %v92 = vld [vmem:[%s0 + $0x2] sm:$0x3]
  %v93 = vsub.f32 %v92, %v55
  %v94 = vmul.f32 %v93, %v87
  %v95 = vpack.c.bf16 %v94, %v94
  %v96 = vld [vmem:[%s2] sm:$0x1]
  %v97 = vld [vmem:[%s1] sm:$0xf]
  %v98 = vld [vmem:[%s1 + $0x4] sm:$0xf]
  %v101 = vunpack.c.l.b16 %v97
  %v102 = vunpack.c.l.b16 %v98
  %v103 = vpack.c.b16 %v102, %v101
  %vm105 = vcmask 130048
  %v107 = vsel %vm105, %v91, 0
  %109 = vmatpush.bf16.msra.mxu0 0
  %110 = vmatpush.bf16.msra.mxu0 0
  %111 = vmatpush.bf16.msra.mxu0 0
  %112 = vmatpush.bf16.msra.mxu0 0
  %113 = vmatpush.bf16.msra.mxu0 0
  %114 = vmatpush.bf16.msra.mxu0 0
  %115 = vmatpush.bf16.msra.mxu0 0
  %116 = vmatpush.bf16.msra.mxu0 %v103
  %117 = vmatmul.bf16.gmra.mxu0 %v107
  %v118 = vpop.f32.mrf.mxu0
  %v119 = vadd.f32 0.0, %v118
  %v120 = vpop.f32.mrf.mxu0
  %121 = vdwg.mxu0
  %v123 = vperm.slane %v96, 0
  %v125 = vadd.f32 %v123, %v119
  %s126 = scalar_lea.vmem %s1, 8
  %v127 = vld [vmem:[%s126] sm:$0xf]
  %v128 = vld [vmem:[%s126 + $0x4] sm:$0xf]
  %130 = vrot.lane.b32.xlu0 %v91, 112
  %v131 = vpop.permute.xlu0 %130
  %v134 = vunpack.c.l.b16 %v127
  %v135 = vunpack.c.l.b16 %v128
  %v136 = vpack.c.b16 %v135, %v134
  %v139 = vsel %vm105, %v131, 0
  %141 = vmatpush.bf16.msra.mxu0 0
  %142 = vmatpush.bf16.msra.mxu0 0
  %143 = vmatpush.bf16.msra.mxu0 0
  %144 = vmatpush.bf16.msra.mxu0 0
  %145 = vmatpush.bf16.msra.mxu0 0
  %146 = vmatpush.bf16.msra.mxu0 0
  %147 = vmatpush.bf16.msra.mxu0 0
  %148 = vmatpush.bf16.msra.mxu0 %v136
  %149 = vmatmul.bf16.gmra.mxu0 %v139
  %v150 = vpop.f32.mrf.mxu0
  %v151 = vadd.f32 0.0, %v150
  %v152 = vpop.f32.mrf.mxu0
  %153 = vdwg.mxu0
  %v154 = vadd.f32 %v125, %v151
  %s155 = scalar_lea.vmem %s1, 16
  %v156 = vld [vmem:[%s155] sm:$0xf]
  %v157 = vld [vmem:[%s155 + $0x4] sm:$0xf]
  %158 = vrot.lane.b32.xlu0 %v91, 96
  %v159 = vpop.permute.xlu0 %158
  %v162 = vunpack.c.l.b16 %v156
  %v163 = vunpack.c.l.b16 %v157
  %v164 = vpack.c.b16 %v163, %v162
  %v167 = vsel %vm105, %v159, 0
  %169 = vmatpush.bf16.msra.mxu0 0
  %170 = vmatpush.bf16.msra.mxu0 0
  %171 = vmatpush.bf16.msra.mxu0 0
  %172 = vmatpush.bf16.msra.mxu0 0
  %173 = vmatpush.bf16.msra.mxu0 0
  %174 = vmatpush.bf16.msra.mxu0 0
  %175 = vmatpush.bf16.msra.mxu0 0
  %176 = vmatpush.bf16.msra.mxu0 %v164
  %177 = vmatmul.bf16.gmra.mxu0 %v167
  %v178 = vpop.f32.mrf.mxu0
  %v179 = vadd.f32 0.0, %v178
  %v180 = vpop.f32.mrf.mxu0
  %181 = vdwg.mxu0
  %v182 = vadd.f32 %v154, %v179
  %vm183 = vcmp.ge.f32.partialorder %v182, 0.0
  %v184 = vmul.f32 %v182, 0.2
  %v185 = vsel %vm183, %v182, %v184
  %v186 = vpack.c.bf16 %v185, %v185
  %187 = vmatpush.bf16.msra.mxu0 0
  %188 = vmatpush.bf16.msra.mxu0 0
  %189 = vmatpush.bf16.msra.mxu0 0
  %190 = vmatpush.bf16.msra.mxu0 0
  %191 = vmatpush.bf16.msra.mxu0 0
  %192 = vmatpush.bf16.msra.mxu0 0
  %193 = vmatpush.bf16.msra.mxu0 0
  %194 = vmatpush.bf16.msra.mxu0 %v103
  %195 = vmatmul.bf16.gmra.mxu0 %v167
  %v196 = vpop.f32.mrf.mxu0
  %v197 = vadd.f32 0.0, %v196
  %v198 = vpop.f32.mrf.mxu0
  %199 = vdwg.mxu0
  %v200 = vadd.f32 %v123, %v197
  %201 = vrot.lane.b32.xlu0 %v91, 80
  %v202 = vpop.permute.xlu0 %201
  %v204 = vsel %vm105, %v202, 0
  %206 = vmatpush.bf16.msra.mxu0 0
  %207 = vmatpush.bf16.msra.mxu0 0
  %208 = vmatpush.bf16.msra.mxu0 0
  %209 = vmatpush.bf16.msra.mxu0 0
  %210 = vmatpush.bf16.msra.mxu0 0
  %211 = vmatpush.bf16.msra.mxu0 0
  %212 = vmatpush.bf16.msra.mxu0 0
  %213 = vmatpush.bf16.msra.mxu0 %v136
  %214 = vmatmul.bf16.gmra.mxu0 %v204
  %v215 = vpop.f32.mrf.mxu0
  %v216 = vadd.f32 0.0, %v215
  %v217 = vpop.f32.mrf.mxu0
  %218 = vdwg.mxu0
  %v219 = vadd.f32 %v200, %v216
  %220 = vrot.lane.b32.xlu0 %v91, 64
  %v221 = vpop.permute.xlu0 %220
  %v223 = vsel %vm105, %v221, 0
  %225 = vmatpush.bf16.msra.mxu0 0
  %226 = vmatpush.bf16.msra.mxu0 0
  %227 = vmatpush.bf16.msra.mxu0 0
  %228 = vmatpush.bf16.msra.mxu0 0
  %229 = vmatpush.bf16.msra.mxu0 0
  %230 = vmatpush.bf16.msra.mxu0 0
  %231 = vmatpush.bf16.msra.mxu0 0
  %232 = vmatpush.bf16.msra.mxu0 %v164
  %233 = vmatmul.bf16.gmra.mxu0 %v223
  %v234 = vpop.f32.mrf.mxu0
  %v235 = vadd.f32 0.0, %v234
  %v236 = vpop.f32.mrf.mxu0
  %237 = vdwg.mxu0
  %v238 = vadd.f32 %v219, %v235
  %vm239 = vcmp.ge.f32.partialorder %v238, 0.0
  %v240 = vmul.f32 %v238, 0.2
  %v241 = vsel %vm239, %v238, %v240
  %v242 = vpack.c.bf16 %v241, %v241
  %243 = vmatpush.bf16.msra.mxu0 0
  %244 = vmatpush.bf16.msra.mxu0 0
  %245 = vmatpush.bf16.msra.mxu0 0
  %246 = vmatpush.bf16.msra.mxu0 0
  %247 = vmatpush.bf16.msra.mxu0 0
  %248 = vmatpush.bf16.msra.mxu0 0
  %249 = vmatpush.bf16.msra.mxu0 0
  %250 = vmatpush.bf16.msra.mxu0 %v103
  %251 = vmatmul.bf16.gmra.mxu0 %v223
  %v252 = vpop.f32.mrf.mxu0
  %v253 = vadd.f32 0.0, %v252
  %v254 = vpop.f32.mrf.mxu0
  %255 = vdwg.mxu0
  %v256 = vadd.f32 %v123, %v253
  %257 = vrot.lane.b32.xlu0 %v91, 48
  %v258 = vpop.permute.xlu0 %257
  %v260 = vsel %vm105, %v258, 0
  %262 = vmatpush.bf16.msra.mxu0 0
  %263 = vmatpush.bf16.msra.mxu0 0
  %264 = vmatpush.bf16.msra.mxu0 0
  %265 = vmatpush.bf16.msra.mxu0 0
  %266 = vmatpush.bf16.msra.mxu0 0
  %267 = vmatpush.bf16.msra.mxu0 0
  %268 = vmatpush.bf16.msra.mxu0 0
  %269 = vmatpush.bf16.msra.mxu0 %v136
  %270 = vmatmul.bf16.gmra.mxu0 %v260
  %v271 = vpop.f32.mrf.mxu0
  %v272 = vadd.f32 0.0, %v271
  %v273 = vpop.f32.mrf.mxu0
  %274 = vdwg.mxu0
  %v275 = vadd.f32 %v256, %v272
  %276 = vrot.lane.b32.xlu0 %v91, 32
  %v277 = vpop.permute.xlu0 %276
  %v279 = vsel %vm105, %v277, 0
  %281 = vmatpush.bf16.msra.mxu0 0
  %282 = vmatpush.bf16.msra.mxu0 0
  %283 = vmatpush.bf16.msra.mxu0 0
  %284 = vmatpush.bf16.msra.mxu0 0
  %285 = vmatpush.bf16.msra.mxu0 0
  %286 = vmatpush.bf16.msra.mxu0 0
  %287 = vmatpush.bf16.msra.mxu0 0
  %288 = vmatpush.bf16.msra.mxu0 %v164
  %289 = vmatmul.bf16.gmra.mxu0 %v279
  %v290 = vpop.f32.mrf.mxu0
  %v291 = vadd.f32 0.0, %v290
  %v292 = vpop.f32.mrf.mxu0
  %293 = vdwg.mxu0
  %v294 = vadd.f32 %v275, %v291
  %vm295 = vcmp.ge.f32.partialorder %v294, 0.0
  %v296 = vmul.f32 %v294, 0.2
  %v297 = vsel %vm295, %v294, %v296
  %v298 = vpack.c.bf16 %v297, %v297
  %299 = vmatpush.bf16.msra.mxu0 0
  %300 = vmatpush.bf16.msra.mxu0 0
  %301 = vmatpush.bf16.msra.mxu0 0
  %302 = vmatpush.bf16.msra.mxu0 0
  %303 = vmatpush.bf16.msra.mxu0 0
  %304 = vmatpush.bf16.msra.mxu0 0
  %305 = vmatpush.bf16.msra.mxu0 0
  %306 = vmatpush.bf16.msra.mxu0 %v103
  %307 = vmatmul.bf16.gmra.mxu0 %v279
  %v308 = vpop.f32.mrf.mxu0
  %v309 = vadd.f32 0.0, %v308
  %v310 = vpop.f32.mrf.mxu0
  %311 = vdwg.mxu0
  %v312 = vadd.f32 %v123, %v309
  %313 = vrot.lane.b32.xlu0 %v91, 16
  %v314 = vpop.permute.xlu0 %313
  %v316 = vsel %vm105, %v314, 0
  %318 = vmatpush.bf16.msra.mxu0 0
  %319 = vmatpush.bf16.msra.mxu0 0
  %320 = vmatpush.bf16.msra.mxu0 0
  %321 = vmatpush.bf16.msra.mxu0 0
  %322 = vmatpush.bf16.msra.mxu0 0
  %323 = vmatpush.bf16.msra.mxu0 0
  %324 = vmatpush.bf16.msra.mxu0 0
  %325 = vmatpush.bf16.msra.mxu0 %v136
  %326 = vmatmul.bf16.gmra.mxu0 %v316
  %v327 = vpop.f32.mrf.mxu0
  %v328 = vadd.f32 0.0, %v327
  %v329 = vpop.f32.mrf.mxu0
  %330 = vdwg.mxu0
  %v331 = vadd.f32 %v312, %v328
  %v333 = vsel %vm105, %v95, 0
  %335 = vmatpush.bf16.msra.mxu0 0
  %336 = vmatpush.bf16.msra.mxu0 0
  %337 = vmatpush.bf16.msra.mxu0 0
  %338 = vmatpush.bf16.msra.mxu0 0
  %339 = vmatpush.bf16.msra.mxu0 0
  %340 = vmatpush.bf16.msra.mxu0 0
  %341 = vmatpush.bf16.msra.mxu0 0
  %342 = vmatpush.bf16.msra.mxu0 %v164
  %343 = vmatmul.bf16.gmra.mxu0 %v333
  %v344 = vpop.f32.mrf.mxu0
  %v345 = vadd.f32 0.0, %v344
  %v346 = vpop.f32.mrf.mxu0
  %347 = vdwg.mxu0
  %v348 = vadd.f32 %v331, %v345
  %vm349 = vcmp.ge.f32.partialorder %v348, 0.0
  %v350 = vmul.f32 %v348, 0.2
  %v351 = vsel %vm349, %v348, %v350
  %v352 = vpack.c.bf16 %v351, %v351
  %353 = vmatpush.bf16.msra.mxu0 0
  %354 = vmatpush.bf16.msra.mxu0 0
  %355 = vmatpush.bf16.msra.mxu0 0
  %356 = vmatpush.bf16.msra.mxu0 0
  %357 = vmatpush.bf16.msra.mxu0 0
  %358 = vmatpush.bf16.msra.mxu0 0
  %359 = vmatpush.bf16.msra.mxu0 0
  %360 = vmatpush.bf16.msra.mxu0 %v103
  %361 = vmatmul.bf16.gmra.mxu0 %v333
  %v362 = vpop.f32.mrf.mxu0
  %v363 = vadd.f32 0.0, %v362
  %v364 = vpop.f32.mrf.mxu0
  %365 = vdwg.mxu0
  %v366 = vadd.f32 %v123, %v363
  %368 = vrot.lane.b32.xlu0 %v95, 112
  %v369 = vpop.permute.xlu0 %368
  %v371 = vsel %vm105, %v369, 0
  %373 = vmatpush.bf16.msra.mxu0 0
  %374 = vmatpush.bf16.msra.mxu0 0
  %375 = vmatpush.bf16.msra.mxu0 0
  %376 = vmatpush.bf16.msra.mxu0 0
  %377 = vmatpush.bf16.msra.mxu0 0
  %378 = vmatpush.bf16.msra.mxu0 0
  %379 = vmatpush.bf16.msra.mxu0 0
  %380 = vmatpush.bf16.msra.mxu0 %v136
  %381 = vmatmul.bf16.gmra.mxu0 %v371
  %v382 = vpop.f32.mrf.mxu0
  %v383 = vadd.f32 0.0, %v382
  %v384 = vpop.f32.mrf.mxu0
  %385 = vdwg.mxu0
  %v386 = vadd.f32 %v366, %v383
  %387 = vrot.lane.b32.xlu0 %v95, 96
  %v388 = vpop.permute.xlu0 %387
  %v390 = vsel %vm105, %v388, 0
  %392 = vmatpush.bf16.msra.mxu0 0
  %393 = vmatpush.bf16.msra.mxu0 0
  %394 = vmatpush.bf16.msra.mxu0 0
  %395 = vmatpush.bf16.msra.mxu0 0
  %396 = vmatpush.bf16.msra.mxu0 0
  %397 = vmatpush.bf16.msra.mxu0 0
  %398 = vmatpush.bf16.msra.mxu0 0
  %399 = vmatpush.bf16.msra.mxu0 %v164
  %400 = vmatmul.bf16.gmra.mxu0 %v390
  %v401 = vpop.f32.mrf.mxu0
  %v402 = vadd.f32 0.0, %v401
  %v403 = vpop.f32.mrf.mxu0
  %404 = vdwg.mxu0
  %v405 = vadd.f32 %v386, %v402
  %vm406 = vcmp.ge.f32.partialorder %v405, 0.0
  %v407 = vmul.f32 %v405, 0.2
  %v408 = vsel %vm406, %v405, %v407
  %v409 = vpack.c.bf16 %v408, %v408
  %410 = vmatpush.bf16.msra.mxu0 0
  %411 = vmatpush.bf16.msra.mxu0 0
  %412 = vmatpush.bf16.msra.mxu0 0
  %413 = vmatpush.bf16.msra.mxu0 0
  %414 = vmatpush.bf16.msra.mxu0 0
  %415 = vmatpush.bf16.msra.mxu0 0
  %416 = vmatpush.bf16.msra.mxu0 0
  %417 = vmatpush.bf16.msra.mxu0 %v103
  %418 = vmatmul.bf16.gmra.mxu0 %v390
  %v419 = vpop.f32.mrf.mxu0
  %v420 = vadd.f32 0.0, %v419
  %v421 = vpop.f32.mrf.mxu0
  %422 = vdwg.mxu0
  %v423 = vadd.f32 %v123, %v420
  %424 = vrot.lane.b32.xlu0 %v95, 80
  %v425 = vpop.permute.xlu0 %424
  %v427 = vsel %vm105, %v425, 0
  %429 = vmatpush.bf16.msra.mxu0 0
  %430 = vmatpush.bf16.msra.mxu0 0
  %431 = vmatpush.bf16.msra.mxu0 0
  %432 = vmatpush.bf16.msra.mxu0 0
  %433 = vmatpush.bf16.msra.mxu0 0
  %434 = vmatpush.bf16.msra.mxu0 0
  %435 = vmatpush.bf16.msra.mxu0 0
  %436 = vmatpush.bf16.msra.mxu0 %v136
  %437 = vmatmul.bf16.gmra.mxu0 %v427
  %v438 = vpop.f32.mrf.mxu0
  %v439 = vadd.f32 0.0, %v438
  %v440 = vpop.f32.mrf.mxu0
  %441 = vdwg.mxu0
  %v442 = vadd.f32 %v423, %v439
  %443 = vrot.lane.b32.xlu0 %v95, 64
  %v444 = vpop.permute.xlu0 %443
  %v446 = vsel %vm105, %v444, 0
  %448 = vmatpush.bf16.msra.mxu0 0
  %449 = vmatpush.bf16.msra.mxu0 0
  %450 = vmatpush.bf16.msra.mxu0 0
  %451 = vmatpush.bf16.msra.mxu0 0
  %452 = vmatpush.bf16.msra.mxu0 0
  %453 = vmatpush.bf16.msra.mxu0 0
  %454 = vmatpush.bf16.msra.mxu0 0
  %455 = vmatpush.bf16.msra.mxu0 %v164
  %456 = vmatmul.bf16.gmra.mxu0 %v446
  %v457 = vpop.f32.mrf.mxu0
  %v458 = vadd.f32 0.0, %v457
  %v459 = vpop.f32.mrf.mxu0
  %460 = vdwg.mxu0
  %v461 = vadd.f32 %v442, %v458
  %vm462 = vcmp.ge.f32.partialorder %v461, 0.0
  %v463 = vmul.f32 %v461, 0.2
  %v464 = vsel %vm462, %v461, %v463
  %v465 = vpack.c.bf16 %v464, %v464
  %466 = vmatpush.bf16.msra.mxu0 0
  %467 = vmatpush.bf16.msra.mxu0 0
  %468 = vmatpush.bf16.msra.mxu0 0
  %469 = vmatpush.bf16.msra.mxu0 0
  %470 = vmatpush.bf16.msra.mxu0 0
  %471 = vmatpush.bf16.msra.mxu0 0
  %472 = vmatpush.bf16.msra.mxu0 0
  %473 = vmatpush.bf16.msra.mxu0 %v103
  %474 = vmatmul.bf16.gmra.mxu0 %v446
  %v475 = vpop.f32.mrf.mxu0
  %v476 = vadd.f32 0.0, %v475
  %v477 = vpop.f32.mrf.mxu0
  %478 = vdwg.mxu0
  %v479 = vadd.f32 %v123, %v476
  %480 = vrot.lane.b32.xlu0 %v95, 48
  %v481 = vpop.permute.xlu0 %480
  %v483 = vsel %vm105, %v481, 0
  %485 = vmatpush.bf16.msra.mxu0 0
  %486 = vmatpush.bf16.msra.mxu0 0
  %487 = vmatpush.bf16.msra.mxu0 0
  %488 = vmatpush.bf16.msra.mxu0 0
  %489 = vmatpush.bf16.msra.mxu0 0
  %490 = vmatpush.bf16.msra.mxu0 0
  %491 = vmatpush.bf16.msra.mxu0 0
  %492 = vmatpush.bf16.msra.mxu0 %v136
  %493 = vmatmul.bf16.gmra.mxu0 %v483
  %v494 = vpop.f32.mrf.mxu0
  %v495 = vadd.f32 0.0, %v494
  %v496 = vpop.f32.mrf.mxu0
  %497 = vdwg.mxu0
  %v498 = vadd.f32 %v479, %v495
  %499 = vrot.lane.b32.xlu0 %v95, 32
  %v500 = vpop.permute.xlu0 %499
  %v502 = vsel %vm105, %v500, 0
  %504 = vmatpush.bf16.msra.mxu0 0
  %505 = vmatpush.bf16.msra.mxu0 0
  %506 = vmatpush.bf16.msra.mxu0 0
  %507 = vmatpush.bf16.msra.mxu0 0
  %508 = vmatpush.bf16.msra.mxu0 0
  %509 = vmatpush.bf16.msra.mxu0 0
  %510 = vmatpush.bf16.msra.mxu0 0
  %511 = vmatpush.bf16.msra.mxu0 %v164
  %512 = vmatmul.bf16.gmra.mxu0 %v502
  %v513 = vpop.f32.mrf.mxu0
  %v514 = vadd.f32 0.0, %v513
  %v515 = vpop.f32.mrf.mxu0
  %516 = vdwg.mxu0
  %v517 = vadd.f32 %v498, %v514
  %vm518 = vcmp.ge.f32.partialorder %v517, 0.0
  %v519 = vmul.f32 %v517, 0.2
  %v520 = vsel %vm518, %v517, %v519
  %v521 = vpack.c.bf16 %v520, %v520
  %v522 = vld [vmem:[%s4] sm:$0x1]
  %v523 = vld [vmem:[%s3] sm:$0xf]
  %v524 = vld [vmem:[%s3 + $0x4] sm:$0xf]
  %v525 = vld [vmem:[%s3 + $0x8] sm:$0xf]
  %v526 = vld [vmem:[%s3 + $0xc] sm:$0xf]
  %v527 = vld [vmem:[%s3 + $0x10] sm:$0xf]
  %v528 = vld [vmem:[%s3 + $0x14] sm:$0xf]
  %v529 = vld [vmem:[%s3 + $0x18] sm:$0xf]
  %v530 = vld [vmem:[%s3 + $0x1c] sm:$0xf]
  %v531 = vld [vmem:[%s3 + $0x20] sm:$0xf]
  %v532 = vld [vmem:[%s3 + $0x24] sm:$0xf]
  %v533 = vld [vmem:[%s3 + $0x28] sm:$0xf]
  %v534 = vld [vmem:[%s3 + $0x2c] sm:$0xf]
  %v535 = vld [vmem:[%s3 + $0x30] sm:$0xf]
  %v536 = vld [vmem:[%s3 + $0x34] sm:$0xf]
  %v551 = vunpack.c.l.b16 %v523
  %v552 = vunpack.c.l.b16 %v524
  %v553 = vunpack.c.l.b16 %v525
  %v554 = vunpack.c.l.b16 %v526
  %v555 = vunpack.c.l.b16 %v527
  %v556 = vunpack.c.l.b16 %v528
  %v557 = vunpack.c.l.b16 %v529
  %v558 = vunpack.c.l.b16 %v530
  %v559 = vunpack.c.l.b16 %v531
  %v560 = vunpack.c.l.b16 %v532
  %v561 = vunpack.c.l.b16 %v533
  %v562 = vunpack.c.l.b16 %v534
  %v563 = vunpack.c.l.b16 %v535
  %v564 = vunpack.c.l.b16 %v536
  %v565 = vpack.c.b16 %v552, %v551
  %v566 = vpack.c.b16 %v554, %v553
  %v567 = vpack.c.b16 %v556, %v555
  %v568 = vpack.c.b16 %v558, %v557
  %v569 = vpack.c.b16 %v560, %v559
  %v570 = vpack.c.b16 %v562, %v561
  %v571 = vpack.c.b16 %v564, %v563
  %vm579 = vcmask 916480
  %v581 = vsel %vm579, %v186, 0
  %583 = vmatpush.bf16.msra.mxu0 0
  %584 = vmatpush.bf16.msra.mxu0 %v571
  %585 = vmatpush.bf16.msra.mxu0 %v570
  %586 = vmatpush.bf16.msra.mxu0 %v569
  %587 = vmatpush.bf16.msra.mxu0 %v568
  %588 = vmatpush.bf16.msra.mxu0 %v567
  %589 = vmatpush.bf16.msra.mxu0 %v566
  %590 = vmatpush.bf16.msra.mxu0 %v565
  %591 = vmatmul.bf16.gmra.mxu0 %v581
  %v592 = vpop.f32.mrf.mxu0
  %v593 = vadd.f32 0.0, %v592
  %v594 = vpop.f32.mrf.mxu0
  %595 = vdwg.mxu0
  %v597 = vperm.slane %v522, 0
  %v599 = vadd.f32 %v597, %v593
  %s600 = scalar_lea.vmem %s3, 56
  %v601 = vld [vmem:[%s600] sm:$0xf]
  %v602 = vld [vmem:[%s600 + $0x4] sm:$0xf]
  %v603 = vld [vmem:[%s600 + $0x8] sm:$0xf]
  %v604 = vld [vmem:[%s600 + $0xc] sm:$0xf]
  %v605 = vld [vmem:[%s600 + $0x10] sm:$0xf]
  %v606 = vld [vmem:[%s600 + $0x14] sm:$0xf]
  %v607 = vld [vmem:[%s600 + $0x18] sm:$0xf]
  %v608 = vld [vmem:[%s600 + $0x1c] sm:$0xf]
  %v609 = vld [vmem:[%s600 + $0x20] sm:$0xf]
  %v610 = vld [vmem:[%s600 + $0x24] sm:$0xf]
  %v611 = vld [vmem:[%s600 + $0x28] sm:$0xf]
  %v612 = vld [vmem:[%s600 + $0x2c] sm:$0xf]
  %v613 = vld [vmem:[%s600 + $0x30] sm:$0xf]
  %v614 = vld [vmem:[%s600 + $0x34] sm:$0xf]
  %v629 = vunpack.c.l.b16 %v601
  %v630 = vunpack.c.l.b16 %v602
  %v631 = vunpack.c.l.b16 %v603
  %v632 = vunpack.c.l.b16 %v604
  %v633 = vunpack.c.l.b16 %v605
  %v634 = vunpack.c.l.b16 %v606
  %v635 = vunpack.c.l.b16 %v607
  %v636 = vunpack.c.l.b16 %v608
  %v637 = vunpack.c.l.b16 %v609
  %v638 = vunpack.c.l.b16 %v610
  %v639 = vunpack.c.l.b16 %v611
  %v640 = vunpack.c.l.b16 %v612
  %v641 = vunpack.c.l.b16 %v613
  %v642 = vunpack.c.l.b16 %v614
  %v643 = vpack.c.b16 %v630, %v629
  %v644 = vpack.c.b16 %v632, %v631
  %v645 = vpack.c.b16 %v634, %v633
  %v646 = vpack.c.b16 %v636, %v635
  %v647 = vpack.c.b16 %v638, %v637
  %v648 = vpack.c.b16 %v640, %v639
  %v649 = vpack.c.b16 %v642, %v641
  %v658 = vsel %vm579, %v242, 0
  %660 = vmatpush.bf16.msra.mxu0 0
  %661 = vmatpush.bf16.msra.mxu0 %v649
  %662 = vmatpush.bf16.msra.mxu0 %v648
  %663 = vmatpush.bf16.msra.mxu0 %v647
  %664 = vmatpush.bf16.msra.mxu0 %v646
  %665 = vmatpush.bf16.msra.mxu0 %v645
  %666 = vmatpush.bf16.msra.mxu0 %v644
  %667 = vmatpush.bf16.msra.mxu0 %v643
  %668 = vmatmul.bf16.gmra.mxu0 %v658
  %v669 = vpop.f32.mrf.mxu0
  %v670 = vadd.f32 0.0, %v669
  %v671 = vpop.f32.mrf.mxu0
  %672 = vdwg.mxu0
  %v673 = vadd.f32 %v599, %v670
  %s674 = scalar_lea.vmem %s3, 112
  %v675 = vld [vmem:[%s674] sm:$0xf]
  %v676 = vld [vmem:[%s674 + $0x4] sm:$0xf]
  %v677 = vld [vmem:[%s674 + $0x8] sm:$0xf]
  %v678 = vld [vmem:[%s674 + $0xc] sm:$0xf]
  %v679 = vld [vmem:[%s674 + $0x10] sm:$0xf]
  %v680 = vld [vmem:[%s674 + $0x14] sm:$0xf]
  %v681 = vld [vmem:[%s674 + $0x18] sm:$0xf]
  %v682 = vld [vmem:[%s674 + $0x1c] sm:$0xf]
  %v683 = vld [vmem:[%s674 + $0x20] sm:$0xf]
  %v684 = vld [vmem:[%s674 + $0x24] sm:$0xf]
  %v685 = vld [vmem:[%s674 + $0x28] sm:$0xf]
  %v686 = vld [vmem:[%s674 + $0x2c] sm:$0xf]
  %v687 = vld [vmem:[%s674 + $0x30] sm:$0xf]
  %v688 = vld [vmem:[%s674 + $0x34] sm:$0xf]
  %v703 = vunpack.c.l.b16 %v675
  %v704 = vunpack.c.l.b16 %v676
  %v705 = vunpack.c.l.b16 %v677
  %v706 = vunpack.c.l.b16 %v678
  %v707 = vunpack.c.l.b16 %v679
  %v708 = vunpack.c.l.b16 %v680
  %v709 = vunpack.c.l.b16 %v681
  %v710 = vunpack.c.l.b16 %v682
  %v711 = vunpack.c.l.b16 %v683
  %v712 = vunpack.c.l.b16 %v684
  %v713 = vunpack.c.l.b16 %v685
  %v714 = vunpack.c.l.b16 %v686
  %v715 = vunpack.c.l.b16 %v687
  %v716 = vunpack.c.l.b16 %v688
  %v717 = vpack.c.b16 %v704, %v703
  %v718 = vpack.c.b16 %v706, %v705
  %v719 = vpack.c.b16 %v708, %v707
  %v720 = vpack.c.b16 %v710, %v709
  %v721 = vpack.c.b16 %v712, %v711
  %v722 = vpack.c.b16 %v714, %v713
  %v723 = vpack.c.b16 %v716, %v715
  %v732 = vsel %vm579, %v298, 0
  %734 = vmatpush.bf16.msra.mxu0 0
  %735 = vmatpush.bf16.msra.mxu0 %v723
  %736 = vmatpush.bf16.msra.mxu0 %v722
  %737 = vmatpush.bf16.msra.mxu0 %v721
  %738 = vmatpush.bf16.msra.mxu0 %v720
  %739 = vmatpush.bf16.msra.mxu0 %v719
  %740 = vmatpush.bf16.msra.mxu0 %v718
  %741 = vmatpush.bf16.msra.mxu0 %v717
  %742 = vmatmul.bf16.gmra.mxu0 %v732
  %v743 = vpop.f32.mrf.mxu0
  %v744 = vadd.f32 0.0, %v743
  %v745 = vpop.f32.mrf.mxu0
  %746 = vdwg.mxu0
  %v747 = vadd.f32 %v673, %v744
  %vm748 = vcmp.ge.f32.partialorder %v747, 0.0
  %v749 = vmul.f32 %v747, 0.2
  %v750 = vsel %vm748, %v747, %v749
  %v751 = vpack.c.bf16 %v750, %v750
  %752 = vmatpush.bf16.msra.mxu0 0
  %753 = vmatpush.bf16.msra.mxu0 %v571
  %754 = vmatpush.bf16.msra.mxu0 %v570
  %755 = vmatpush.bf16.msra.mxu0 %v569
  %756 = vmatpush.bf16.msra.mxu0 %v568
  %757 = vmatpush.bf16.msra.mxu0 %v567
  %758 = vmatpush.bf16.msra.mxu0 %v566
  %759 = vmatpush.bf16.msra.mxu0 %v565
  %760 = vmatmul.bf16.gmra.mxu0 %v732
  %v761 = vpop.f32.mrf.mxu0
  %v762 = vadd.f32 0.0, %v761
  %v763 = vpop.f32.mrf.mxu0
  %764 = vdwg.mxu0
  %v765 = vadd.f32 %v597, %v762
  %v767 = vsel %vm579, %v352, 0
  %769 = vmatpush.bf16.msra.mxu0 0
  %770 = vmatpush.bf16.msra.mxu0 %v649
  %771 = vmatpush.bf16.msra.mxu0 %v648
  %772 = vmatpush.bf16.msra.mxu0 %v647
  %773 = vmatpush.bf16.msra.mxu0 %v646
  %774 = vmatpush.bf16.msra.mxu0 %v645
  %775 = vmatpush.bf16.msra.mxu0 %v644
  %776 = vmatpush.bf16.msra.mxu0 %v643
  %777 = vmatmul.bf16.gmra.mxu0 %v767
  %v778 = vpop.f32.mrf.mxu0
  %v779 = vadd.f32 0.0, %v778
  %v780 = vpop.f32.mrf.mxu0
  %781 = vdwg.mxu0
  %v782 = vadd.f32 %v765, %v779
  %v784 = vsel %vm579, %v409, 0
  %786 = vmatpush.bf16.msra.mxu0 0
  %787 = vmatpush.bf16.msra.mxu0 %v723
  %788 = vmatpush.bf16.msra.mxu0 %v722
  %789 = vmatpush.bf16.msra.mxu0 %v721
  %790 = vmatpush.bf16.msra.mxu0 %v720
  %791 = vmatpush.bf16.msra.mxu0 %v719
  %792 = vmatpush.bf16.msra.mxu0 %v718
  %793 = vmatpush.bf16.msra.mxu0 %v717
  %794 = vmatmul.bf16.gmra.mxu0 %v784
  %v795 = vpop.f32.mrf.mxu0
  %v796 = vadd.f32 0.0, %v795
  %v797 = vpop.f32.mrf.mxu0
  %798 = vdwg.mxu0
  %v799 = vadd.f32 %v782, %v796
  %vm800 = vcmp.ge.f32.partialorder %v799, 0.0
  %v801 = vmul.f32 %v799, 0.2
  %v802 = vsel %vm800, %v799, %v801
  %v803 = vpack.c.bf16 %v802, %v802
  %804 = vmatpush.bf16.msra.mxu0 0
  %805 = vmatpush.bf16.msra.mxu0 %v571
  %806 = vmatpush.bf16.msra.mxu0 %v570
  %807 = vmatpush.bf16.msra.mxu0 %v569
  %808 = vmatpush.bf16.msra.mxu0 %v568
  %809 = vmatpush.bf16.msra.mxu0 %v567
  %810 = vmatpush.bf16.msra.mxu0 %v566
  %811 = vmatpush.bf16.msra.mxu0 %v565
  %812 = vmatmul.bf16.gmra.mxu0 %v784
  %v813 = vpop.f32.mrf.mxu0
  %v814 = vadd.f32 0.0, %v813
  %v815 = vpop.f32.mrf.mxu0
  %816 = vdwg.mxu0
  %v817 = vadd.f32 %v597, %v814
  %v819 = vsel %vm579, %v465, 0
  %821 = vmatpush.bf16.msra.mxu0 0
  %822 = vmatpush.bf16.msra.mxu0 %v649
  %823 = vmatpush.bf16.msra.mxu0 %v648
  %824 = vmatpush.bf16.msra.mxu0 %v647
  %825 = vmatpush.bf16.msra.mxu0 %v646
  %826 = vmatpush.bf16.msra.mxu0 %v645
  %827 = vmatpush.bf16.msra.mxu0 %v644
  %828 = vmatpush.bf16.msra.mxu0 %v643
  %829 = vmatmul.bf16.gmra.mxu0 %v819
  %v830 = vpop.f32.mrf.mxu0
  %v831 = vadd.f32 0.0, %v830
  %v832 = vpop.f32.mrf.mxu0
  %833 = vdwg.mxu0
  %v834 = vadd.f32 %v817, %v831
  %v836 = vsel %vm579, %v521, 0
  %838 = vmatpush.bf16.msra.mxu0 0
  %839 = vmatpush.bf16.msra.mxu0 %v723
  %840 = vmatpush.bf16.msra.mxu0 %v722
  %841 = vmatpush.bf16.msra.mxu0 %v721
  %842 = vmatpush.bf16.msra.mxu0 %v720
  %843 = vmatpush.bf16.msra.mxu0 %v719
  %844 = vmatpush.bf16.msra.mxu0 %v718
  %845 = vmatpush.bf16.msra.mxu0 %v717
  %846 = vmatmul.bf16.gmra.mxu0 %v836
  %v847 = vpop.f32.mrf.mxu0
  %v848 = vadd.f32 0.0, %v847
  %v849 = vpop.f32.mrf.mxu0
  %850 = vdwg.mxu0
  %v851 = vadd.f32 %v834, %v848
  %vm852 = vcmp.ge.f32.partialorder %v851, 0.0
  %v853 = vmul.f32 %v851, 0.2
  %v854 = vsel %vm852, %v851, %v853
  %v855 = vpack.c.bf16 %v854, %v854
  %v856 = vld [vmem:[%s6] sm:$0x1]
  %v857 = vld [vmem:[%s5] sm:$0xf]
  %v858 = vld [vmem:[%s5 + $0x4] sm:$0xf]
  %v859 = vld [vmem:[%s5 + $0x8] sm:$0xf]
  %v860 = vld [vmem:[%s5 + $0xc] sm:$0xf]
  %v861 = vld [vmem:[%s5 + $0x10] sm:$0xf]
  %v862 = vld [vmem:[%s5 + $0x14] sm:$0xf]
  %v863 = vld [vmem:[%s5 + $0x18] sm:$0xf]
  %v864 = vld [vmem:[%s5 + $0x1c] sm:$0xf]
  %v865 = vld [vmem:[%s5 + $0x20] sm:$0xf]
  %v866 = vld [vmem:[%s5 + $0x24] sm:$0xf]
  %v867 = vld [vmem:[%s5 + $0x28] sm:$0xf]
  %v868 = vld [vmem:[%s5 + $0x2c] sm:$0xf]
  %v881 = vunpack.c.l.b16 %v857
  %v882 = vunpack.c.l.b16 %v858
  %v883 = vunpack.c.l.b16 %v859
  %v884 = vunpack.c.l.b16 %v860
  %v885 = vunpack.c.l.b16 %v861
  %v886 = vunpack.c.l.b16 %v862
  %v887 = vunpack.c.l.b16 %v863
  %v888 = vunpack.c.l.b16 %v864
  %v889 = vunpack.c.l.b16 %v865
  %v890 = vunpack.c.l.b16 %v866
  %v891 = vunpack.c.l.b16 %v867
  %v892 = vunpack.c.l.b16 %v868
  %v893 = vpack.c.b16 %v882, %v881
  %v894 = vpack.c.b16 %v884, %v883
  %v895 = vpack.c.b16 %v886, %v885
  %v896 = vpack.c.b16 %v888, %v887
  %v897 = vpack.c.b16 %v890, %v889
  %v898 = vpack.c.b16 %v892, %v891
  %vm905 = vcmask 785408
  %v907 = vsel %vm905, %v751, 0
  %909 = vmatpush.bf16.msra.mxu0 0
  %910 = vmatpush.bf16.msra.mxu0 0
  %911 = vmatpush.bf16.msra.mxu0 %v898
  %912 = vmatpush.bf16.msra.mxu0 %v897
  %913 = vmatpush.bf16.msra.mxu0 %v896
  %914 = vmatpush.bf16.msra.mxu0 %v895
  %915 = vmatpush.bf16.msra.mxu0 %v894
  %916 = vmatpush.bf16.msra.mxu0 %v893
  %917 = vmatmul.bf16.gmra.mxu0 %v907
  %v918 = vpop.f32.mrf.mxu0
  %v919 = vadd.f32 0.0, %v918
  %v920 = vpop.f32.mrf.mxu0
  %921 = vdwg.mxu0
  %v923 = vperm.slane %v856, 0
  %v925 = vadd.f32 %v923, %v919
  %s926 = scalar_lea.vmem %s5, 48
  %v927 = vld [vmem:[%s926] sm:$0xf]
  %v928 = vld [vmem:[%s926 + $0x4] sm:$0xf]
  %v929 = vld [vmem:[%s926 + $0x8] sm:$0xf]
  %v930 = vld [vmem:[%s926 + $0xc] sm:$0xf]
  %v931 = vld [vmem:[%s926 + $0x10] sm:$0xf]
  %v932 = vld [vmem:[%s926 + $0x14] sm:$0xf]
  %v933 = vld [vmem:[%s926 + $0x18] sm:$0xf]
  %v934 = vld [vmem:[%s926 + $0x1c] sm:$0xf]
  %v935 = vld [vmem:[%s926 + $0x20] sm:$0xf]
  %v936 = vld [vmem:[%s926 + $0x24] sm:$0xf]
  %v937 = vld [vmem:[%s926 + $0x28] sm:$0xf]
  %v938 = vld [vmem:[%s926 + $0x2c] sm:$0xf]
  %v951 = vunpack.c.l.b16 %v927
  %v952 = vunpack.c.l.b16 %v928
  %v953 = vunpack.c.l.b16 %v929
  %v954 = vunpack.c.l.b16 %v930
  %v955 = vunpack.c.l.b16 %v931
  %v956 = vunpack.c.l.b16 %v932
  %v957 = vunpack.c.l.b16 %v933
  %v958 = vunpack.c.l.b16 %v934
  %v959 = vunpack.c.l.b16 %v935
  %v960 = vunpack.c.l.b16 %v936
  %v961 = vunpack.c.l.b16 %v937
  %v962 = vunpack.c.l.b16 %v938
  %v963 = vpack.c.b16 %v952, %v951
  %v964 = vpack.c.b16 %v954, %v953
  %v965 = vpack.c.b16 %v956, %v955
  %v966 = vpack.c.b16 %v958, %v957
  %v967 = vpack.c.b16 %v960, %v959
  %v968 = vpack.c.b16 %v962, %v961
  %v976 = vsel %vm905, %v803, 0
  %978 = vmatpush.bf16.msra.mxu0 0
  %979 = vmatpush.bf16.msra.mxu0 0
  %980 = vmatpush.bf16.msra.mxu0 %v968
  %981 = vmatpush.bf16.msra.mxu0 %v967
  %982 = vmatpush.bf16.msra.mxu0 %v966
  %983 = vmatpush.bf16.msra.mxu0 %v965
  %984 = vmatpush.bf16.msra.mxu0 %v964
  %985 = vmatpush.bf16.msra.mxu0 %v963
  %986 = vmatmul.bf16.gmra.mxu0 %v976
  %v987 = vpop.f32.mrf.mxu0
  %v988 = vadd.f32 0.0, %v987
  %v989 = vpop.f32.mrf.mxu0
  %990 = vdwg.mxu0
  %v991 = vadd.f32 %v925, %v988
  %s992 = scalar_lea.vmem %s5, 96
  %v993 = vld [vmem:[%s992] sm:$0xf]
  %v994 = vld [vmem:[%s992 + $0x4] sm:$0xf]
  %v995 = vld [vmem:[%s992 + $0x8] sm:$0xf]
  %v996 = vld [vmem:[%s992 + $0xc] sm:$0xf]
  %v997 = vld [vmem:[%s992 + $0x10] sm:$0xf]
  %v998 = vld [vmem:[%s992 + $0x14] sm:$0xf]
  %v999 = vld [vmem:[%s992 + $0x18] sm:$0xf]
  %v1000 = vld [vmem:[%s992 + $0x1c] sm:$0xf]
  %v1001 = vld [vmem:[%s992 + $0x20] sm:$0xf]
  %v1002 = vld [vmem:[%s992 + $0x24] sm:$0xf]
  %v1003 = vld [vmem:[%s992 + $0x28] sm:$0xf]
  %v1004 = vld [vmem:[%s992 + $0x2c] sm:$0xf]
  %v1017 = vunpack.c.l.b16 %v993
  %v1018 = vunpack.c.l.b16 %v994
  %v1019 = vunpack.c.l.b16 %v995
  %v1020 = vunpack.c.l.b16 %v996
  %v1021 = vunpack.c.l.b16 %v997
  %v1022 = vunpack.c.l.b16 %v998
  %v1023 = vunpack.c.l.b16 %v999
  %v1024 = vunpack.c.l.b16 %v1000
  %v1025 = vunpack.c.l.b16 %v1001
  %v1026 = vunpack.c.l.b16 %v1002
  %v1027 = vunpack.c.l.b16 %v1003
  %v1028 = vunpack.c.l.b16 %v1004
  %v1029 = vpack.c.b16 %v1018, %v1017
  %v1030 = vpack.c.b16 %v1020, %v1019
  %v1031 = vpack.c.b16 %v1022, %v1021
  %v1032 = vpack.c.b16 %v1024, %v1023
  %v1033 = vpack.c.b16 %v1026, %v1025
  %v1034 = vpack.c.b16 %v1028, %v1027
  %v1042 = vsel %vm905, %v855, 0
  %1044 = vmatpush.bf16.msra.mxu0 0
  %1045 = vmatpush.bf16.msra.mxu0 0
  %1046 = vmatpush.bf16.msra.mxu0 %v1034
  %1047 = vmatpush.bf16.msra.mxu0 %v1033
  %1048 = vmatpush.bf16.msra.mxu0 %v1032
  %1049 = vmatpush.bf16.msra.mxu0 %v1031
  %1050 = vmatpush.bf16.msra.mxu0 %v1030
  %1051 = vmatpush.bf16.msra.mxu0 %v1029
  %1052 = vmatmul.bf16.gmra.mxu0 %v1042
  %v1053 = vpop.f32.mrf.mxu0
  %v1054 = vadd.f32 0.0, %v1053
  %v1055 = vpop.f32.mrf.mxu0
  %1056 = vdwg.mxu0
  %v1057 = vadd.f32 %v991, %v1054
  %vm1058 = vcmp.ge.f32.partialorder %v1057, 0.0
  %v1059 = vmul.f32 %v1057, 0.2
  %v1060 = vsel %vm1058, %v1057, %v1059
  %v1061 = vld [vmem:[%s7] sm:$0x1]
  %v1063 = vperm.slane %v1061, 0
  %v1065 = vmul.f32 %v1060, %v1063
  %vm1066 = vcmask 517120
  %v1067 = vsel %vm1066, %v1065, 0.0
  %1068 = vadd.xlane.f32.xlu0 %v1067
  %v1069 = vpop.xlane.xlu0 %1068
  %v1070 = vld [vmem:[#allocation2] sm:$0x1]
  %v1072 = vperm.slane %v1070, 0
  %v1074 = vadd.f32 %v1069, %v1072
  %v1075 = vsub.f32 0.0, %v1074
  %v1076 = vmul.f32 %v1075, 1.442695
  %v1077 = vpow.pop %v1076
  %v1078 = vadd.f32 %v1077, 1.0
  %v1079 = vrcp.pop %v1078
  %v1080 = vmul.f32 %v1078, %v1079
  %v1081 = vsub.f32 1.0, %v1080
  %v1082 = vmul.f32 %v1079, %v1081
  %v1083 = vadd.f32 %v1079, %v1082
  %vm1084 = vweird.f32 %v1078
  %vm1085 = vweird.f32 %v1079
  %vm1086 = vmor %vm1084, %vm1085
  %v1087 = vsel %vm1086, %v1079, %v1083
  %v1088 = vand.u32 2147483647, %v1078
  %vm1089 = vcmp.eq.f32.partialorder %v1088, 8.507059e+37
  %v1090 = vand.u32 %v1078, 2147483648
  %v1091 = vor.u32 1.1754944e-38, %v1090
  %v1092 = vsel %vm1089, %v1091, %v1087
  %v1093 = vmul.f32 1.0, %v1092
  %vm1094 = vcmask 1024
  %1095 = vst.msk [vmem:[%s9] sm:$0x3] %vm1094, %v1093
  // Predicated region
  $region38: #{discriminator_forward.1} parent=0 // pred_check
    _
  $region39: #{discriminator_forward.1} parent=0 // pred_check_branch
    %1097 = sbr.rel (0) target = $region41
  $region40: #{discriminator_forward.1} parent=0 // pred_region
    _
  $region41: #{discriminator_forward.1} parent=0 // pred_fallthru
    _
  // Predicated region
  $region42: #{discriminator_forward.1} parent=0 // pred_check
    _
  $region43: #{discriminator_forward.1} parent=0 // pred_check_branch
    %1099 = sbr.rel (0) target = $region45
  $region44: #{discriminator_forward.1} parent=0 // pred_region
    _
  $region45: #{discriminator_forward.1} parent=0 // pred_fallthru
    _

</llo_original>
